<compile_context>
chip_gen: v7x
topology: tpu7x:2x2x1
jax: 0.10.0
libtpu: 0.0.40
codegen_flags: <defaults>
</compile_context>

<pallas_src>
import functools

import jax
import jax.numpy as jnp
from jax.experimental import pallas as pl
from jax.experimental.pallas import tpu as pltpu


# ----------------------------- in-kernel helpers -----------------------------

def _shift_lanes(x, s):
    """Zero-padded static shift along the last (lane) axis: out[:, p] = x[:, p + s]
    (0 where p + s is out of range).  Lowers to XLU lane shifts on Mosaic (same
    hardware path as pltpu.roll) and also runs under interpret mode."""
    if s == 0:
        return x
    rows, n = x.shape
    pad = jnp.zeros((rows, abs(s)), x.dtype)
    if s > 0:
        return jnp.concatenate([x[:, s:], pad], axis=-1)
    return jnp.concatenate([pad, x[:, : n + s]], axis=-1)


def _conv_same(x, mix, bias, valid, w, k):
    """Stride-1 zero-padded 'same' conv on planes flattened to h*w lanes.
    x:     (rows_in, hw)            f32
    mix:   (rows_out, k*k*rows_in)  bf16  (channel mix, folded in prepare_params)
    bias:  (rows_out, 1)            f32
    valid: (k*k, hw)                f32   (precomputed boundary masks)
    Per tap: lane shift + mask (XLU/VPU); the k*k shifted copies form the im2col
    block and ONE bf16 MXU matmul (f32 accumulation) does the channel mix."""
    pad = (k - 1) // 2
    shifted = []
    t = 0
    for dy in range(k):
        for dx in range(k):
            s = (dy - pad) * w + (dx - pad)
            shifted.append(_shift_lanes(x, s) * valid[t:t + 1, :])
            t += 1
    patches = jnp.concatenate(shifted, axis=0).astype(jnp.bfloat16)
    return jnp.dot(mix, patches, preferred_element_type=jnp.float32) + bias


# ----------------------------- fused block kernel -----------------------------

def _stylegan_block_kernel(x_ref, z_ref, noise_ref, c1m_ref, c1b_ref,
                           c2m_ref, c2b_ref, sm_ref, sb_ref, up_ref, ns_ref,
                           av_ref, sv_ref, o_ref, *, C, W, Wz, K, KS):
    # --- style path: the four 5x5 convs on z fused into one matmul, then one
    #     kron'd bilinear-upsample (align_corners=True) matmul. ---
    z = z_ref[...].astype(jnp.float32)                                   # (Cz, Hz*Wz)
    style = _conv_same(z, sm_ref[...], sb_ref[...], sv_ref[...], Wz, KS)  # (4C, Hz*Wz)
    style_up = jnp.dot(style.astype(jnp.bfloat16), up_ref[...],
                       preferred_element_type=jnp.float32)               # (4C, H*W)

    def noisy_adain(x, mean_up, scale_up, noise, nscale_col):
        xn = x + nscale_col * noise                     # x + noise_scale * randn
        mu = jnp.mean(xn, axis=-1, keepdims=True)       # lane reductions
        var = jnp.mean(jnp.square(xn - mu), axis=-1, keepdims=True)
        xhat = (xn - mu) * jax.lax.rsqrt(var + 1e-5)    # InstanceNorm2d (biased var)
        return jnp.tanh(mean_up + scale_up * xhat)

    av = av_ref[...]
    # --- main path: conv1 -> adain1 -> conv2 -> adain2, resident in vregs/VMEM. ---
    x = x_ref[...].astype(jnp.float32)                                   # (C, H*W)
    x = _conv_same(x, c1m_ref[...], c1b_ref[...], av, W, K)
    x = noisy_adain(x, style_up[0:C], style_up[C:2 * C], noise_ref[0], ns_ref[0])
    x = _conv_same(x, c2m_ref[...], c2b_ref[...], av, W, K)
    x = noisy_adain(x, style_up[2 * C:3 * C], style_up[3 * C:4 * C],
                    noise_ref[1], ns_ref[1])
    o_ref[...] = x.astype(o_ref.dtype)                  # full-width lane-dense store


# ----------------------------- wrapper -----------------------------

def stylegan_block(x_nchw, z_nchw, noise, prep):
    """StyleGanBlock forward.  noise: (2, C, H, W), the two randn(1,C,H,W) draws
    (one per NoisyAdaIn), shared across batch like the reference.
    Returns (x_out, z) like the PyTorch module."""
    N, C, H, W = x_nchw.shape
    _, Cz, Hz, Wz = z_nchw.shape
    HW, HzWz = H * W, Hz * Wz
    K = int(round(prep["act_valid"].shape[0] ** 0.5))
    KS = int(round(prep["style_valid"].shape[0] ** 0.5))
    kernel = functools.partial(_stylegan_block_kernel, C=C, W=W, Wz=Wz, K=K, KS=KS)
    out = pl.pallas_call(
        kernel,
        out_shape=jax.ShapeDtypeStruct((N, C, HW), x_nchw.dtype),
        grid=(N,),                                                  # one batch item / step
        in_specs=[
            pl.BlockSpec((None, C, HW), lambda n: (n, 0, 0)),       # x (lane-dense)
            pl.BlockSpec((None, Cz, HzWz), lambda n: (n, 0, 0)),    # z
            pl.BlockSpec((2, C, HW), lambda n: (0, 0, 0)),          # noise (batch-shared)
            pl.BlockSpec((C, K * K * C), lambda n: (0, 0)),         # conv1 mix (bf16)
            pl.BlockSpec((C, 1), lambda n: (0, 0)),                 # conv1 bias
            pl.BlockSpec((C, K * K * C), lambda n: (0, 0)),         # conv2 mix (bf16)
            pl.BlockSpec((C, 1), lambda n: (0, 0)),                 # conv2 bias
            pl.BlockSpec((4 * C, KS * KS * Cz), lambda n: (0, 0)),  # style mix (bf16)
            pl.BlockSpec((4 * C, 1), lambda n: (0, 0)),             # style bias
            pl.BlockSpec((HzWz, HW), lambda n: (0, 0)),             # upsample matrix (bf16)
            pl.BlockSpec((2, C, 1), lambda n: (0, 0, 0)),           # noise scales
            pl.BlockSpec((K * K, HW), lambda n: (0, 0)),            # act conv masks
            pl.BlockSpec((KS * KS, HzWz), lambda n: (0, 0)),        # style conv masks
        ],
        out_specs=pl.BlockSpec((None, C, HW), lambda n: (n, 0, 0)),
        compiler_params=pltpu.CompilerParams(
            dimension_semantics=("parallel",)),        # v7x: shard batch over both TCs
    )(
        x_nchw.reshape(N, C, HW),                      # NCHW -> lane-dense: free reshape
        z_nchw.reshape(N, Cz, HzWz),
        noise.reshape(2, C, HW),
        prep["conv1_mix"], prep["conv1_b"],
        prep["conv2_mix"], prep["conv2_b"],
        prep["style_mix"], prep["style_b"],
        prep["up_mat"], prep["nscale"],
        prep["act_valid"], prep["style_valid"],
    )
    return out.reshape(N, C, H, W), z_nchw


# ----------------------------- parameter folding -----------------------------

def _bilinear_matrix(out_size, in_size):
    """Interpolation matrix of nn.Upsample(mode='bilinear', align_corners=True)."""
    if in_size == 1:
        return jnp.ones((out_size, 1), jnp.float32)
    denom = max(out_size - 1, 1)
    src = jnp.arange(out_size, dtype=jnp.float32) * (in_size - 1) / denom
    i0 = jnp.clip(jnp.floor(src).astype(jnp.int32), 0, in_size - 2)
    frac = src - i0.astype(jnp.float32)
    rows = jnp.arange(out_size)
    a = jnp.zeros((out_size, in_size), jnp.float32)
    a = a.at[rows, i0].add(1.0 - frac)
    a = a.at[rows, i0 + 1].add(frac)
    return a


def _valid_masks(h, w, k):
    """(k*k, h*w) 0/1 rows marking, per conv tap, which output pixels have an
    in-bounds source pixel (zero padding elsewhere); also kills the row wrap of
    the flattened lane shift."""
    pad = (k - 1) // 2
    yy, xx = jnp.meshgrid(jnp.arange(h), jnp.arange(w), indexing="ij")
    yy = yy.reshape(1, h * w)
    xx = xx.reshape(1, h * w)
    rows = []
    for dy in range(k):
        for dx in range(k):
            sy, sx = dy - pad, dx - pad
            rows.append(((yy + sy >= 0) & (yy + sy < h) &
                         (xx + sx >= 0) & (xx + sx < w)).astype(jnp.float32))
    return jnp.concatenate(rows, axis=0)


def prepare_params(params, input_shape, latent_shape):
    """Fold parameters into matmul-ready constants once, outside the jitted step:
    per-tap channel-mix matrices (bf16, matching the in-kernel im2col tap order),
    f32 bias / noise-scale columns, the fused bilinear-upsample matrix
    kron(A_h, A_w).T (bf16), and the per-tap boundary masks.
    NOTE: conv weights here are (K, K, Cin, Cout); real PyTorch (Cout, Cin, K, K)
    weights must be permuted (2, 3, 1, 0) before folding."""
    H, W = input_shape
    Hz, Wz = latent_shape

    def col(v):
        return v.reshape(-1, 1).astype(jnp.float32)

    def conv_mix(w):                              # (K,K,Ci,Co) -> (Co, K*K*Ci)
        k = w.shape[0]
        cols = [w[dy, dx].T for dy in range(k) for dx in range(k)]
        return jnp.concatenate(cols, axis=1).astype(jnp.bfloat16)

    def style_mix(ws):                            # 4 x (KS,KS,Cz,C) -> (4*C, KS*KS*Cz)
        k = ws[0].shape[0]
        cols = [jnp.concatenate([w[dy, dx].T for w in ws], axis=0)
                for dy in range(k) for dx in range(k)]
        return jnp.concatenate(cols, axis=1).astype(jnp.bfloat16)

    a1, a2 = params["ada1"], params["ada2"]
    style_ws = [a1["to_mean_w"], a1["to_scale_w"], a2["to_mean_w"], a2["to_scale_w"]]
    style_bs = [a1["to_mean_b"], a1["to_scale_b"], a2["to_mean_b"], a2["to_scale_b"]]
    K = params["conv1_w"].shape[0]
    KS = style_ws[0].shape[0]
    return {
        "conv1_mix": conv_mix(params["conv1_w"]), "conv1_b": col(params["conv1_b"]),
        "conv2_mix": conv_mix(params["conv2_w"]), "conv2_b": col(params["conv2_b"]),
        "style_mix": style_mix(style_ws),
        "style_b": jnp.concatenate([col(b) for b in style_bs], axis=0),
        "up_mat": jnp.kron(_bilinear_matrix(H, Hz),
                           _bilinear_matrix(W, Wz)).T.astype(jnp.bfloat16),
        "nscale": jnp.stack([col(a1["noise_scale"]), col(a2["noise_scale"])]),
        "act_valid": _valid_masks(H, W, K),
        "style_valid": _valid_masks(Hz, Wz, KS),
    }


# ----------------------------- parameter init -----------------------------

def _conv_init(key, k, ci, co):
    kw, kb = jax.random.split(key)
    fan_in = ci * k * k
    w = jax.random.normal(kw, (k, k, ci, co), jnp.float32) / jnp.sqrt(fan_in)
    b = jax.random.normal(kb, (co,), jnp.float32) * 0.1
    return w, b


def init_params(key, channels, latent_channels, kernel_size):
    ks = jax.random.split(key, 4)

    def ada_init(k):
        k0, k1, k2 = jax.random.split(k, 3)
        mw, mb = _conv_init(k1, 5, latent_channels, channels)   # NoisyAdaIn: k=5, pad=2
        sw, sb = _conv_init(k2, 5, latent_channels, channels)
        return {
            "noise_scale": jax.random.normal(k0, (channels,), jnp.float32),
            "to_mean_w": mw, "to_mean_b": mb,
            "to_scale_w": sw, "to_scale_b": sb,
        }

    c1w, c1b = _conv_init(ks[0], kernel_size, channels, channels)
    c2w, c2b = _conv_init(ks[1], kernel_size, channels, channels)
    return {
        "conv1_w": c1w, "conv1_b": c1b,
        "conv2_w": c2w, "conv2_b": c2b,
        "ada1": ada_init(ks[2]),
        "ada2": ada_init(ks[3]),
    }


# ----------------------------- main -----------------------------

if __name__ == "__main__":
    key = jax.random.PRNGKey(0)
    k_param, k_x, k_z, k_noise = jax.random.split(key, 4)

    N, C, H, W = 2, 4, 16, 16          # batch, channels, input_shape
    Cz, Hz, Wz = 4, 8, 8               # latent feature map (upsampled to 16x16)
    kernel_size = 3                    # StyleGanBlock conv kernel size

    params = init_params(k_param, C, Cz, kernel_size)
    prep = prepare_params(params, (H, W), (Hz, Wz))     # one-time weight folding

    x = jax.random.normal(k_x, (N, C, H, W), jnp.float32)
    z = jax.random.normal(k_z, (N, Cz, Hz, Wz), jnp.float32)
    # Two independent randn(1, C, H, W) planes (one per NoisyAdaIn), shared across
    # batch like the reference (random stream differs from torch, distribution same).
    noise = jax.random.normal(k_noise, (2, C, H, W), jnp.float32)

    fwd = jax.jit(stylegan_block)
    out_x, out_z = fwd(x, z, noise, prep)
    jax.block_until_ready((out_x, out_z))

    assert out_x.shape == (N, C, H, W)
    assert out_z.shape == z.shape
    assert bool(jnp.all(jnp.isfinite(out_x)))
    print("KERNEL_OK")
</pallas_src>

<mosaic_0001>
module attributes {stable_mosaic.version = 11 : i64} {
  func.func @_stylegan_block_kernel(%arg0: i32, %arg1: memref<1x4x256xf32, #tpu.memory_space<vmem>>, %arg2: memref<1x4x64xf32, #tpu.memory_space<vmem>>, %arg3: memref<2x4x256xf32, #tpu.memory_space<vmem>>, %arg4: memref<4x36xbf16, #tpu.memory_space<vmem>>, %arg5: memref<4x1xf32, #tpu.memory_space<vmem>>, %arg6: memref<4x36xbf16, #tpu.memory_space<vmem>>, %arg7: memref<4x1xf32, #tpu.memory_space<vmem>>, %arg8: memref<16x100xbf16, #tpu.memory_space<vmem>>, %arg9: memref<16x1xf32, #tpu.memory_space<vmem>>, %arg10: memref<64x256xbf16, #tpu.memory_space<vmem>>, %arg11: memref<2x4x1xf32, #tpu.memory_space<vmem>>, %arg12: memref<9x256xf32, #tpu.memory_space<vmem>>, %arg13: memref<25x64xf32, #tpu.memory_space<vmem>>, %arg14: memref<1x4x256xf32, #tpu.memory_space<vmem>>) attributes {dimension_semantics = [#tpu.dimension_semantics<parallel>], iteration_bounds = array<i64: 2>, scalar_prefetch = 0 : i64, scratch_operands = 0 : i64, tpu.core_type = #tpu.core_type<tc>, window_params = [{transform_indices = @transform_0, window_bounds = array<i64: 1, 4, 256>}, {transform_indices = @transform_1, window_bounds = array<i64: 1, 4, 64>}, {pipeline_mode = #tpu.pipeline_mode<synchronous>, transform_indices = @transform_2, window_bounds = array<i64: 2, 4, 256>}, {pipeline_mode = #tpu.pipeline_mode<synchronous>, transform_indices = @transform_3, window_bounds = array<i64: 4, 36>}, {pipeline_mode = #tpu.pipeline_mode<synchronous>, transform_indices = @transform_4, window_bounds = array<i64: 4, 1>}, {pipeline_mode = #tpu.pipeline_mode<synchronous>, transform_indices = @transform_5, window_bounds = array<i64: 4, 36>}, {pipeline_mode = #tpu.pipeline_mode<synchronous>, transform_indices = @transform_6, window_bounds = array<i64: 4, 1>}, {pipeline_mode = #tpu.pipeline_mode<synchronous>, transform_indices = @transform_7, window_bounds = array<i64: 16, 100>}, {pipeline_mode = #tpu.pipeline_mode<synchronous>, transform_indices = @transform_8, window_bounds = array<i64: 16, 1>}, {pipeline_mode = #tpu.pipeline_mode<synchronous>, transform_indices = @transform_9, window_bounds = array<i64: 64, 256>}, {pipeline_mode = #tpu.pipeline_mode<synchronous>, transform_indices = @transform_10, window_bounds = array<i64: 2, 4, 1>}, {pipeline_mode = #tpu.pipeline_mode<synchronous>, transform_indices = @transform_11, window_bounds = array<i64: 9, 256>}, {pipeline_mode = #tpu.pipeline_mode<synchronous>, transform_indices = @transform_12, window_bounds = array<i64: 25, 64>}, {transform_indices = @transform_13, window_bounds = array<i64: 1, 4, 256>}]} {
    %c0 = arith.constant 0 : index
    %c0_0 = arith.constant 0 : index
    %c0_1 = arith.constant 0 : index
    %0 = vector.load %arg2[%c0, %c0_0, %c0_1] : memref<1x4x64xf32, #tpu.memory_space<vmem>>, vector<1x4x64xf32>
    %1 = vector.shape_cast %0 : vector<1x4x64xf32> to vector<4x64xf32>
    %c0_2 = arith.constant 0 : index
    %c0_3 = arith.constant 0 : index
    %2 = vector.load %arg8[%c0_2, %c0_3] : memref<16x100xbf16, #tpu.memory_space<vmem>>, vector<16x100xbf16>
    %c0_4 = arith.constant 0 : index
    %c0_5 = arith.constant 0 : index
    %3 = vector.load %arg9[%c0_4, %c0_5] : memref<16x1xf32, #tpu.memory_space<vmem>>, vector<16x1xf32>
    %c0_6 = arith.constant 0 : index
    %c0_7 = arith.constant 0 : index
    %4 = vector.load %arg13[%c0_6, %c0_7] : memref<25x64xf32, #tpu.memory_space<vmem>>, vector<25x64xf32>
    %cst = arith.constant 0.000000e+00 : f32
    %5 = vector.broadcast %cst : f32 to vector<4x18xf32>
    %6 = vector.extract_strided_slice %1 {offsets = [0, 0], sizes = [4, 46], strides = [1, 1]} : vector<4x64xf32> to vector<4x46xf32>
    %7 = tpu.concatenate %5, %6 in 1 : vector<4x18xf32>, vector<4x46xf32> -> vector<4x64xf32>
    %8 = vector.extract_strided_slice %4 {offsets = [0, 0], sizes = [1, 64], strides = [1, 1]} : vector<25x64xf32> to vector<1x64xf32>
    %9 = vector.broadcast %8 : vector<1x64xf32> to vector<4x64xf32>
    %10 = arith.mulf %7, %9 : vector<4x64xf32>
    %cst_8 = arith.constant 0.000000e+00 : f32
    %11 = vector.broadcast %cst_8 : f32 to vector<4x17xf32>
    %12 = vector.extract_strided_slice %1 {offsets = [0, 0], sizes = [4, 47], strides = [1, 1]} : vector<4x64xf32> to vector<4x47xf32>
    %13 = tpu.concatenate %11, %12 in 1 : vector<4x17xf32>, vector<4x47xf32> -> vector<4x64xf32>
    %14 = vector.extract_strided_slice %4 {offsets = [1, 0], sizes = [1, 64], strides = [1, 1]} : vector<25x64xf32> to vector<1x64xf32>
    %15 = vector.broadcast %14 : vector<1x64xf32> to vector<4x64xf32>
    %16 = arith.mulf %13, %15 : vector<4x64xf32>
    %cst_9 = arith.constant 0.000000e+00 : f32
    %17 = vector.broadcast %cst_9 : f32 to vector<4x16xf32>
    %18 = vector.extract_strided_slice %1 {offsets = [0, 0], sizes = [4, 48], strides = [1, 1]} : vector<4x64xf32> to vector<4x48xf32>
    %19 = tpu.concatenate %17, %18 in 1 : vector<4x16xf32>, vector<4x48xf32> -> vector<4x64xf32>
    %20 = vector.extract_strided_slice %4 {offsets = [2, 0], sizes = [1, 64], strides = [1, 1]} : vector<25x64xf32> to vector<1x64xf32>
    %21 = vector.broadcast %20 : vector<1x64xf32> to vector<4x64xf32>
    %22 = arith.mulf %19, %21 : vector<4x64xf32>
    %cst_10 = arith.constant 0.000000e+00 : f32
    %23 = vector.broadcast %cst_10 : f32 to vector<4x15xf32>
    %24 = vector.extract_strided_slice %1 {offsets = [0, 0], sizes = [4, 49], strides = [1, 1]} : vector<4x64xf32> to vector<4x49xf32>
    %25 = tpu.concatenate %23, %24 in 1 : vector<4x15xf32>, vector<4x49xf32> -> vector<4x64xf32>
    %26 = vector.extract_strided_slice %4 {offsets = [3, 0], sizes = [1, 64], strides = [1, 1]} : vector<25x64xf32> to vector<1x64xf32>
    %27 = vector.broadcast %26 : vector<1x64xf32> to vector<4x64xf32>
    %28 = arith.mulf %25, %27 : vector<4x64xf32>
    %cst_11 = arith.constant 0.000000e+00 : f32
    %29 = vector.broadcast %cst_11 : f32 to vector<4x14xf32>
    %30 = vector.extract_strided_slice %1 {offsets = [0, 0], sizes = [4, 50], strides = [1, 1]} : vector<4x64xf32> to vector<4x50xf32>
    %31 = tpu.concatenate %29, %30 in 1 : vector<4x14xf32>, vector<4x50xf32> -> vector<4x64xf32>
    %32 = vector.extract_strided_slice %4 {offsets = [4, 0], sizes = [1, 64], strides = [1, 1]} : vector<25x64xf32> to vector<1x64xf32>
    %33 = vector.broadcast %32 : vector<1x64xf32> to vector<4x64xf32>
    %34 = arith.mulf %31, %33 : vector<4x64xf32>
    %cst_12 = arith.constant 0.000000e+00 : f32
    %35 = vector.broadcast %cst_12 : f32 to vector<4x10xf32>
    %36 = vector.extract_strided_slice %1 {offsets = [0, 0], sizes = [4, 54], strides = [1, 1]} : vector<4x64xf32> to vector<4x54xf32>
    %37 = tpu.concatenate %35, %36 in 1 : vector<4x10xf32>, vector<4x54xf32> -> vector<4x64xf32>
    %38 = vector.extract_strided_slice %4 {offsets = [5, 0], sizes = [1, 64], strides = [1, 1]} : vector<25x64xf32> to vector<1x64xf32>
    %39 = vector.broadcast %38 : vector<1x64xf32> to vector<4x64xf32>
    %40 = arith.mulf %37, %39 : vector<4x64xf32>
    %cst_13 = arith.constant 0.000000e+00 : f32
    %41 = vector.broadcast %cst_13 : f32 to vector<4x9xf32>
    %42 = vector.extract_strided_slice %1 {offsets = [0, 0], sizes = [4, 55], strides = [1, 1]} : vector<4x64xf32> to vector<4x55xf32>
    %43 = tpu.concatenate %41, %42 in 1 : vector<4x9xf32>, vector<4x55xf32> -> vector<4x64xf32>
    %44 = vector.extract_strided_slice %4 {offsets = [6, 0], sizes = [1, 64], strides = [1, 1]} : vector<25x64xf32> to vector<1x64xf32>
    %45 = vector.broadcast %44 : vector<1x64xf32> to vector<4x64xf32>
    %46 = arith.mulf %43, %45 : vector<4x64xf32>
    %cst_14 = arith.constant 0.000000e+00 : f32
    %47 = vector.broadcast %cst_14 : f32 to vector<4x8xf32>
    %48 = vector.extract_strided_slice %1 {offsets = [0, 0], sizes = [4, 56], strides = [1, 1]} : vector<4x64xf32> to vector<4x56xf32>
    %49 = tpu.concatenate %47, %48 in 1 : vector<4x8xf32>, vector<4x56xf32> -> vector<4x64xf32>
    %50 = vector.extract_strided_slice %4 {offsets = [7, 0], sizes = [1, 64], strides = [1, 1]} : vector<25x64xf32> to vector<1x64xf32>
    %51 = vector.broadcast %50 : vector<1x64xf32> to vector<4x64xf32>
    %52 = arith.mulf %49, %51 : vector<4x64xf32>
    %cst_15 = arith.constant 0.000000e+00 : f32
    %53 = vector.broadcast %cst_15 : f32 to vector<4x7xf32>
    %54 = vector.extract_strided_slice %1 {offsets = [0, 0], sizes = [4, 57], strides = [1, 1]} : vector<4x64xf32> to vector<4x57xf32>
    %55 = tpu.concatenate %53, %54 in 1 : vector<4x7xf32>, vector<4x57xf32> -> vector<4x64xf32>
    %56 = vector.extract_strided_slice %4 {offsets = [8, 0], sizes = [1, 64], strides = [1, 1]} : vector<25x64xf32> to vector<1x64xf32>
    %57 = vector.broadcast %56 : vector<1x64xf32> to vector<4x64xf32>
    %58 = arith.mulf %55, %57 : vector<4x64xf32>
    %cst_16 = arith.constant 0.000000e+00 : f32
    %59 = vector.broadcast %cst_16 : f32 to vector<4x6xf32>
    %60 = vector.extract_strided_slice %1 {offsets = [0, 0], sizes = [4, 58], strides = [1, 1]} : vector<4x64xf32> to vector<4x58xf32>
    %61 = tpu.concatenate %59, %60 in 1 : vector<4x6xf32>, vector<4x58xf32> -> vector<4x64xf32>
    %62 = vector.extract_strided_slice %4 {offsets = [9, 0], sizes = [1, 64], strides = [1, 1]} : vector<25x64xf32> to vector<1x64xf32>
    %63 = vector.broadcast %62 : vector<1x64xf32> to vector<4x64xf32>
    %64 = arith.mulf %61, %63 : vector<4x64xf32>
    %cst_17 = arith.constant 0.000000e+00 : f32
    %65 = vector.broadcast %cst_17 : f32 to vector<4x2xf32>
    %66 = vector.extract_strided_slice %1 {offsets = [0, 0], sizes = [4, 62], strides = [1, 1]} : vector<4x64xf32> to vector<4x62xf32>
    %67 = tpu.concatenate %65, %66 in 1 : vector<4x2xf32>, vector<4x62xf32> -> vector<4x64xf32>
    %68 = vector.extract_strided_slice %4 {offsets = [10, 0], sizes = [1, 64], strides = [1, 1]} : vector<25x64xf32> to vector<1x64xf32>
    %69 = vector.broadcast %68 : vector<1x64xf32> to vector<4x64xf32>
    %70 = arith.mulf %67, %69 : vector<4x64xf32>
    %cst_18 = arith.constant 0.000000e+00 : f32
    %71 = vector.broadcast %cst_18 : f32 to vector<4x1xf32>
    %72 = vector.extract_strided_slice %1 {offsets = [0, 0], sizes = [4, 63], strides = [1, 1]} : vector<4x64xf32> to vector<4x63xf32>
    %73 = tpu.concatenate %71, %72 in 1 : vector<4x1xf32>, vector<4x63xf32> -> vector<4x64xf32>
    %74 = vector.extract_strided_slice %4 {offsets = [11, 0], sizes = [1, 64], strides = [1, 1]} : vector<25x64xf32> to vector<1x64xf32>
    %75 = vector.broadcast %74 : vector<1x64xf32> to vector<4x64xf32>
    %76 = arith.mulf %73, %75 : vector<4x64xf32>
    %77 = vector.extract_strided_slice %4 {offsets = [12, 0], sizes = [1, 64], strides = [1, 1]} : vector<25x64xf32> to vector<1x64xf32>
    %78 = vector.broadcast %77 : vector<1x64xf32> to vector<4x64xf32>
    %79 = arith.mulf %1, %78 : vector<4x64xf32>
    %cst_19 = arith.constant 0.000000e+00 : f32
    %80 = vector.broadcast %cst_19 : f32 to vector<4x1xf32>
    %81 = vector.extract_strided_slice %1 {offsets = [0, 1], sizes = [4, 63], strides = [1, 1]} : vector<4x64xf32> to vector<4x63xf32>
    %82 = tpu.concatenate %81, %80 in 1 : vector<4x63xf32>, vector<4x1xf32> -> vector<4x64xf32>
    %83 = vector.extract_strided_slice %4 {offsets = [13, 0], sizes = [1, 64], strides = [1, 1]} : vector<25x64xf32> to vector<1x64xf32>
    %84 = vector.broadcast %83 : vector<1x64xf32> to vector<4x64xf32>
    %85 = arith.mulf %82, %84 : vector<4x64xf32>
    %cst_20 = arith.constant 0.000000e+00 : f32
    %86 = vector.broadcast %cst_20 : f32 to vector<4x2xf32>
    %87 = vector.extract_strided_slice %1 {offsets = [0, 2], sizes = [4, 62], strides = [1, 1]} : vector<4x64xf32> to vector<4x62xf32>
    %88 = tpu.concatenate %87, %86 in 1 : vector<4x62xf32>, vector<4x2xf32> -> vector<4x64xf32>
    %89 = vector.extract_strided_slice %4 {offsets = [14, 0], sizes = [1, 64], strides = [1, 1]} : vector<25x64xf32> to vector<1x64xf32>
    %90 = vector.broadcast %89 : vector<1x64xf32> to vector<4x64xf32>
    %91 = arith.mulf %88, %90 : vector<4x64xf32>
    %cst_21 = arith.constant 0.000000e+00 : f32
    %92 = vector.broadcast %cst_21 : f32 to vector<4x6xf32>
    %93 = vector.extract_strided_slice %1 {offsets = [0, 6], sizes = [4, 58], strides = [1, 1]} : vector<4x64xf32> to vector<4x58xf32>
    %94 = tpu.concatenate %93, %92 in 1 : vector<4x58xf32>, vector<4x6xf32> -> vector<4x64xf32>
    %95 = vector.extract_strided_slice %4 {offsets = [15, 0], sizes = [1, 64], strides = [1, 1]} : vector<25x64xf32> to vector<1x64xf32>
    %96 = vector.broadcast %95 : vector<1x64xf32> to vector<4x64xf32>
    %97 = arith.mulf %94, %96 : vector<4x64xf32>
    %cst_22 = arith.constant 0.000000e+00 : f32
    %98 = vector.broadcast %cst_22 : f32 to vector<4x7xf32>
    %99 = vector.extract_strided_slice %1 {offsets = [0, 7], sizes = [4, 57], strides = [1, 1]} : vector<4x64xf32> to vector<4x57xf32>
    %100 = tpu.concatenate %99, %98 in 1 : vector<4x57xf32>, vector<4x7xf32> -> vector<4x64xf32>
    %101 = vector.extract_strided_slice %4 {offsets = [16, 0], sizes = [1, 64], strides = [1, 1]} : vector<25x64xf32> to vector<1x64xf32>
    %102 = vector.broadcast %101 : vector<1x64xf32> to vector<4x64xf32>
    %103 = arith.mulf %100, %102 : vector<4x64xf32>
    %cst_23 = arith.constant 0.000000e+00 : f32
    %104 = vector.broadcast %cst_23 : f32 to vector<4x8xf32>
    %105 = vector.extract_strided_slice %1 {offsets = [0, 8], sizes = [4, 56], strides = [1, 1]} : vector<4x64xf32> to vector<4x56xf32>
    %106 = tpu.concatenate %105, %104 in 1 : vector<4x56xf32>, vector<4x8xf32> -> vector<4x64xf32>
    %107 = vector.extract_strided_slice %4 {offsets = [17, 0], sizes = [1, 64], strides = [1, 1]} : vector<25x64xf32> to vector<1x64xf32>
    %108 = vector.broadcast %107 : vector<1x64xf32> to vector<4x64xf32>
    %109 = arith.mulf %106, %108 : vector<4x64xf32>
    %cst_24 = arith.constant 0.000000e+00 : f32
    %110 = vector.broadcast %cst_24 : f32 to vector<4x9xf32>
    %111 = vector.extract_strided_slice %1 {offsets = [0, 9], sizes = [4, 55], strides = [1, 1]} : vector<4x64xf32> to vector<4x55xf32>
    %112 = tpu.concatenate %111, %110 in 1 : vector<4x55xf32>, vector<4x9xf32> -> vector<4x64xf32>
    %113 = vector.extract_strided_slice %4 {offsets = [18, 0], sizes = [1, 64], strides = [1, 1]} : vector<25x64xf32> to vector<1x64xf32>
    %114 = vector.broadcast %113 : vector<1x64xf32> to vector<4x64xf32>
    %115 = arith.mulf %112, %114 : vector<4x64xf32>
    %cst_25 = arith.constant 0.000000e+00 : f32
    %116 = vector.broadcast %cst_25 : f32 to vector<4x10xf32>
    %117 = vector.extract_strided_slice %1 {offsets = [0, 10], sizes = [4, 54], strides = [1, 1]} : vector<4x64xf32> to vector<4x54xf32>
    %118 = tpu.concatenate %117, %116 in 1 : vector<4x54xf32>, vector<4x10xf32> -> vector<4x64xf32>
    %119 = vector.extract_strided_slice %4 {offsets = [19, 0], sizes = [1, 64], strides = [1, 1]} : vector<25x64xf32> to vector<1x64xf32>
    %120 = vector.broadcast %119 : vector<1x64xf32> to vector<4x64xf32>
    %121 = arith.mulf %118, %120 : vector<4x64xf32>
    %cst_26 = arith.constant 0.000000e+00 : f32
    %122 = vector.broadcast %cst_26 : f32 to vector<4x14xf32>
    %123 = vector.extract_strided_slice %1 {offsets = [0, 14], sizes = [4, 50], strides = [1, 1]} : vector<4x64xf32> to vector<4x50xf32>
    %124 = tpu.concatenate %123, %122 in 1 : vector<4x50xf32>, vector<4x14xf32> -> vector<4x64xf32>
    %125 = vector.extract_strided_slice %4 {offsets = [20, 0], sizes = [1, 64], strides = [1, 1]} : vector<25x64xf32> to vector<1x64xf32>
    %126 = vector.broadcast %125 : vector<1x64xf32> to vector<4x64xf32>
    %127 = arith.mulf %124, %126 : vector<4x64xf32>
    %cst_27 = arith.constant 0.000000e+00 : f32
    %128 = vector.broadcast %cst_27 : f32 to vector<4x15xf32>
    %129 = vector.extract_strided_slice %1 {offsets = [0, 15], sizes = [4, 49], strides = [1, 1]} : vector<4x64xf32> to vector<4x49xf32>
    %130 = tpu.concatenate %129, %128 in 1 : vector<4x49xf32>, vector<4x15xf32> -> vector<4x64xf32>
    %131 = vector.extract_strided_slice %4 {offsets = [21, 0], sizes = [1, 64], strides = [1, 1]} : vector<25x64xf32> to vector<1x64xf32>
    %132 = vector.broadcast %131 : vector<1x64xf32> to vector<4x64xf32>
    %133 = arith.mulf %130, %132 : vector<4x64xf32>
    %cst_28 = arith.constant 0.000000e+00 : f32
    %134 = vector.broadcast %cst_28 : f32 to vector<4x16xf32>
    %135 = vector.extract_strided_slice %1 {offsets = [0, 16], sizes = [4, 48], strides = [1, 1]} : vector<4x64xf32> to vector<4x48xf32>
    %136 = tpu.concatenate %135, %134 in 1 : vector<4x48xf32>, vector<4x16xf32> -> vector<4x64xf32>
    %137 = vector.extract_strided_slice %4 {offsets = [22, 0], sizes = [1, 64], strides = [1, 1]} : vector<25x64xf32> to vector<1x64xf32>
    %138 = vector.broadcast %137 : vector<1x64xf32> to vector<4x64xf32>
    %139 = arith.mulf %136, %138 : vector<4x64xf32>
    %cst_29 = arith.constant 0.000000e+00 : f32
    %140 = vector.broadcast %cst_29 : f32 to vector<4x17xf32>
    %141 = vector.extract_strided_slice %1 {offsets = [0, 17], sizes = [4, 47], strides = [1, 1]} : vector<4x64xf32> to vector<4x47xf32>
    %142 = tpu.concatenate %141, %140 in 1 : vector<4x47xf32>, vector<4x17xf32> -> vector<4x64xf32>
    %143 = vector.extract_strided_slice %4 {offsets = [23, 0], sizes = [1, 64], strides = [1, 1]} : vector<25x64xf32> to vector<1x64xf32>
    %144 = vector.broadcast %143 : vector<1x64xf32> to vector<4x64xf32>
    %145 = arith.mulf %142, %144 : vector<4x64xf32>
    %cst_30 = arith.constant 0.000000e+00 : f32
    %146 = vector.broadcast %cst_30 : f32 to vector<4x18xf32>
    %147 = vector.extract_strided_slice %1 {offsets = [0, 18], sizes = [4, 46], strides = [1, 1]} : vector<4x64xf32> to vector<4x46xf32>
    %148 = tpu.concatenate %147, %146 in 1 : vector<4x46xf32>, vector<4x18xf32> -> vector<4x64xf32>
    %149 = vector.extract_strided_slice %4 {offsets = [24, 0], sizes = [1, 64], strides = [1, 1]} : vector<25x64xf32> to vector<1x64xf32>
    %150 = vector.broadcast %149 : vector<1x64xf32> to vector<4x64xf32>
    %151 = arith.mulf %148, %150 : vector<4x64xf32>
    %152 = tpu.concatenate %10, %16, %22, %28, %34, %40, %46, %52, %58, %64, %70, %76, %79, %85, %91, %97 in 0 : vector<4x64xf32>, vector<4x64xf32>, vector<4x64xf32>, vector<4x64xf32>, vector<4x64xf32>, vector<4x64xf32>, vector<4x64xf32>, vector<4x64xf32>, vector<4x64xf32>, vector<4x64xf32>, vector<4x64xf32>, vector<4x64xf32>, vector<4x64xf32>, vector<4x64xf32>, vector<4x64xf32>, vector<4x64xf32> -> vector<64x64xf32>
    %153 = tpu.concatenate %103, %109, %115, %121, %127, %133, %139, %145, %151 in 0 : vector<4x64xf32>, vector<4x64xf32>, vector<4x64xf32>, vector<4x64xf32>, vector<4x64xf32>, vector<4x64xf32>, vector<4x64xf32>, vector<4x64xf32>, vector<4x64xf32> -> vector<36x64xf32>
    %154 = tpu.concatenate %152, %153 in 0 : vector<64x64xf32>, vector<36x64xf32> -> vector<100x64xf32>
    %155 = arith.truncf %154 : vector<100x64xf32> to vector<100x64xbf16>
    %cst_31 = arith.constant dense<0.000000e+00> : vector<16x64xf32>
    %156 = tpu.matmul %2, %155, %cst_31 {dimension_numbers = #tpu.dot_dimension_numbers<[1], [0], [0], [1], [0, 0, 1, 1], [], []>} : vector<16x100xbf16>, vector<100x64xbf16>, vector<16x64xf32> -> vector<16x64xf32>
    %157 = vector.broadcast %3 : vector<16x1xf32> to vector<16x64xf32>
    %158 = arith.addf %156, %157 : vector<16x64xf32>
    %159 = arith.truncf %158 : vector<16x64xf32> to vector<16x64xbf16>
    %c0_32 = arith.constant 0 : index
    %c0_33 = arith.constant 0 : index
    %160 = vector.load %arg10[%c0_32, %c0_33] : memref<64x256xbf16, #tpu.memory_space<vmem>>, vector<64x256xbf16>
    %cst_34 = arith.constant dense<0.000000e+00> : vector<16x256xf32>
    %161 = tpu.matmul %159, %160, %cst_34 {dimension_numbers = #tpu.dot_dimension_numbers<[1], [0], [0], [1], [0, 0, 1, 1], [], []>} : vector<16x64xbf16>, vector<64x256xbf16>, vector<16x256xf32> -> vector<16x256xf32>
    %c0_35 = arith.constant 0 : index
    %c0_36 = arith.constant 0 : index
    %162 = vector.load %arg12[%c0_35, %c0_36] : memref<9x256xf32, #tpu.memory_space<vmem>>, vector<9x256xf32>
    %c0_37 = arith.constant 0 : index
    %c0_38 = arith.constant 0 : index
    %c0_39 = arith.constant 0 : index
    %163 = vector.load %arg1[%c0_37, %c0_38, %c0_39] : memref<1x4x256xf32, #tpu.memory_space<vmem>>, vector<1x4x256xf32>
    %164 = vector.shape_cast %163 : vector<1x4x256xf32> to vector<4x256xf32>
    %c0_40 = arith.constant 0 : index
    %c0_41 = arith.constant 0 : index
    %165 = vector.load %arg4[%c0_40, %c0_41] : memref<4x36xbf16, #tpu.memory_space<vmem>>, vector<4x36xbf16>
    %c0_42 = arith.constant 0 : index
    %c0_43 = arith.constant 0 : index
    %166 = vector.load %arg5[%c0_42, %c0_43] : memref<4x1xf32, #tpu.memory_space<vmem>>, vector<4x1xf32>
    %cst_44 = arith.constant 0.000000e+00 : f32
    %167 = vector.broadcast %cst_44 : f32 to vector<4x17xf32>
    %168 = vector.extract_strided_slice %164 {offsets = [0, 0], sizes = [4, 239], strides = [1, 1]} : vector<4x256xf32> to vector<4x239xf32>
    %169 = tpu.concatenate %167, %168 in 1 : vector<4x17xf32>, vector<4x239xf32> -> vector<4x256xf32>
    %170 = vector.extract_strided_slice %162 {offsets = [0, 0], sizes = [1, 256], strides = [1, 1]} : vector<9x256xf32> to vector<1x256xf32>
    %171 = vector.broadcast %170 : vector<1x256xf32> to vector<4x256xf32>
    %172 = arith.mulf %169, %171 : vector<4x256xf32>
    %cst_45 = arith.constant 0.000000e+00 : f32
    %173 = vector.broadcast %cst_45 : f32 to vector<4x16xf32>
    %174 = vector.extract_strided_slice %164 {offsets = [0, 0], sizes = [4, 240], strides = [1, 1]} : vector<4x256xf32> to vector<4x240xf32>
    %175 = tpu.concatenate %173, %174 in 1 : vector<4x16xf32>, vector<4x240xf32> -> vector<4x256xf32>
    %176 = vector.extract_strided_slice %162 {offsets = [1, 0], sizes = [1, 256], strides = [1, 1]} : vector<9x256xf32> to vector<1x256xf32>
    %177 = vector.broadcast %176 : vector<1x256xf32> to vector<4x256xf32>
    %178 = arith.mulf %175, %177 : vector<4x256xf32>
    %cst_46 = arith.constant 0.000000e+00 : f32
    %179 = vector.broadcast %cst_46 : f32 to vector<4x15xf32>
    %180 = vector.extract_strided_slice %164 {offsets = [0, 0], sizes = [4, 241], strides = [1, 1]} : vector<4x256xf32> to vector<4x241xf32>
    %181 = tpu.concatenate %179, %180 in 1 : vector<4x15xf32>, vector<4x241xf32> -> vector<4x256xf32>
    %182 = vector.extract_strided_slice %162 {offsets = [2, 0], sizes = [1, 256], strides = [1, 1]} : vector<9x256xf32> to vector<1x256xf32>
    %183 = vector.broadcast %182 : vector<1x256xf32> to vector<4x256xf32>
    %184 = arith.mulf %181, %183 : vector<4x256xf32>
    %cst_47 = arith.constant 0.000000e+00 : f32
    %185 = vector.broadcast %cst_47 : f32 to vector<4x1xf32>
    %186 = vector.extract_strided_slice %164 {offsets = [0, 0], sizes = [4, 255], strides = [1, 1]} : vector<4x256xf32> to vector<4x255xf32>
    %187 = tpu.concatenate %185, %186 in 1 : vector<4x1xf32>, vector<4x255xf32> -> vector<4x256xf32>
    %188 = vector.extract_strided_slice %162 {offsets = [3, 0], sizes = [1, 256], strides = [1, 1]} : vector<9x256xf32> to vector<1x256xf32>
    %189 = vector.broadcast %188 : vector<1x256xf32> to vector<4x256xf32>
    %190 = arith.mulf %187, %189 : vector<4x256xf32>
    %191 = vector.extract_strided_slice %162 {offsets = [4, 0], sizes = [1, 256], strides = [1, 1]} : vector<9x256xf32> to vector<1x256xf32>
    %192 = vector.broadcast %191 : vector<1x256xf32> to vector<4x256xf32>
    %193 = arith.mulf %164, %192 : vector<4x256xf32>
    %cst_48 = arith.constant 0.000000e+00 : f32
    %194 = vector.broadcast %cst_48 : f32 to vector<4x1xf32>
    %195 = vector.extract_strided_slice %164 {offsets = [0, 1], sizes = [4, 255], strides = [1, 1]} : vector<4x256xf32> to vector<4x255xf32>
    %196 = tpu.concatenate %195, %194 in 1 : vector<4x255xf32>, vector<4x1xf32> -> vector<4x256xf32>
    %197 = vector.extract_strided_slice %162 {offsets = [5, 0], sizes = [1, 256], strides = [1, 1]} : vector<9x256xf32> to vector<1x256xf32>
    %198 = vector.broadcast %197 : vector<1x256xf32> to vector<4x256xf32>
    %199 = arith.mulf %196, %198 : vector<4x256xf32>
    %cst_49 = arith.constant 0.000000e+00 : f32
    %200 = vector.broadcast %cst_49 : f32 to vector<4x15xf32>
    %201 = vector.extract_strided_slice %164 {offsets = [0, 15], sizes = [4, 241], strides = [1, 1]} : vector<4x256xf32> to vector<4x241xf32>
    %202 = tpu.concatenate %201, %200 in 1 : vector<4x241xf32>, vector<4x15xf32> -> vector<4x256xf32>
    %203 = vector.extract_strided_slice %162 {offsets = [6, 0], sizes = [1, 256], strides = [1, 1]} : vector<9x256xf32> to vector<1x256xf32>
    %204 = vector.broadcast %203 : vector<1x256xf32> to vector<4x256xf32>
    %205 = arith.mulf %202, %204 : vector<4x256xf32>
    %cst_50 = arith.constant 0.000000e+00 : f32
    %206 = vector.broadcast %cst_50 : f32 to vector<4x16xf32>
    %207 = vector.extract_strided_slice %164 {offsets = [0, 16], sizes = [4, 240], strides = [1, 1]} : vector<4x256xf32> to vector<4x240xf32>
    %208 = tpu.concatenate %207, %206 in 1 : vector<4x240xf32>, vector<4x16xf32> -> vector<4x256xf32>
    %209 = vector.extract_strided_slice %162 {offsets = [7, 0], sizes = [1, 256], strides = [1, 1]} : vector<9x256xf32> to vector<1x256xf32>
    %210 = vector.broadcast %209 : vector<1x256xf32> to vector<4x256xf32>
    %211 = arith.mulf %208, %210 : vector<4x256xf32>
    %cst_51 = arith.constant 0.000000e+00 : f32
    %212 = vector.broadcast %cst_51 : f32 to vector<4x17xf32>
    %213 = vector.extract_strided_slice %164 {offsets = [0, 17], sizes = [4, 239], strides = [1, 1]} : vector<4x256xf32> to vector<4x239xf32>
    %214 = tpu.concatenate %213, %212 in 1 : vector<4x239xf32>, vector<4x17xf32> -> vector<4x256xf32>
    %215 = vector.extract_strided_slice %162 {offsets = [8, 0], sizes = [1, 256], strides = [1, 1]} : vector<9x256xf32> to vector<1x256xf32>
    %216 = vector.broadcast %215 : vector<1x256xf32> to vector<4x256xf32>
    %217 = arith.mulf %214, %216 : vector<4x256xf32>
    %218 = tpu.concatenate %172, %178, %184, %190, %193, %199, %205, %211, %217 in 0 : vector<4x256xf32>, vector<4x256xf32>, vector<4x256xf32>, vector<4x256xf32>, vector<4x256xf32>, vector<4x256xf32>, vector<4x256xf32>, vector<4x256xf32>, vector<4x256xf32> -> vector<36x256xf32>
    %219 = arith.truncf %218 : vector<36x256xf32> to vector<36x256xbf16>
    %cst_52 = arith.constant dense<0.000000e+00> : vector<4x256xf32>
    %220 = tpu.matmul %165, %219, %cst_52 {dimension_numbers = #tpu.dot_dimension_numbers<[1], [0], [0], [1], [0, 0, 1, 1], [], []>} : vector<4x36xbf16>, vector<36x256xbf16>, vector<4x256xf32> -> vector<4x256xf32>
    %221 = vector.broadcast %166 : vector<4x1xf32> to vector<4x256xf32>
    %222 = arith.addf %220, %221 : vector<4x256xf32>
    %223 = vector.extract_strided_slice %161 {offsets = [0, 0], sizes = [4, 256], strides = [1, 1]} : vector<16x256xf32> to vector<4x256xf32>
    %224 = vector.extract_strided_slice %161 {offsets = [4, 0], sizes = [4, 256], strides = [1, 1]} : vector<16x256xf32> to vector<4x256xf32>
    %c0_53 = arith.constant 0 : index
    %c0_54 = arith.constant 0 : index
    %c0_55 = arith.constant 0 : index
    %225 = vector.load %arg3[%c0_53, %c0_54, %c0_55] : memref<2x4x256xf32, #tpu.memory_space<vmem>>, vector<1x4x256xf32>
    %226 = vector.shape_cast %225 : vector<1x4x256xf32> to vector<4x256xf32>
    %c0_56 = arith.constant 0 : index
    %c0_57 = arith.constant 0 : index
    %c0_58 = arith.constant 0 : index
    %227 = vector.load %arg11[%c0_56, %c0_57, %c0_58] : memref<2x4x1xf32, #tpu.memory_space<vmem>>, vector<1x4x1xf32>
    %228 = vector.shape_cast %227 : vector<1x4x1xf32> to vector<4x1xf32>
    %229 = vector.broadcast %228 : vector<4x1xf32> to vector<4x256xf32>
    %230 = arith.mulf %229, %226 : vector<4x256xf32>
    %231 = arith.addf %222, %230 : vector<4x256xf32>
    %cst_59 = arith.constant dense<0.000000e+00> : vector<4xf32>
    %232 = vector.multi_reduction <add>, %231, %cst_59 [1] : vector<4x256xf32> to vector<4xf32>
    %233 = vector.shape_cast %232 : vector<4xf32> to vector<4x1xf32>
    %cst_60 = arith.constant 2.560000e+02 : f32
    %234 = vector.broadcast %cst_60 : f32 to vector<4x1xf32>
    %235 = arith.divf %233, %234 : vector<4x1xf32>
    %236 = vector.broadcast %235 : vector<4x1xf32> to vector<4x256xf32>
    %237 = arith.subf %231, %236 : vector<4x256xf32>
    %238 = arith.mulf %237, %237 : vector<4x256xf32>
    %cst_61 = arith.constant dense<0.000000e+00> : vector<4xf32>
    %239 = vector.multi_reduction <add>, %238, %cst_61 [1] : vector<4x256xf32> to vector<4xf32>
    %240 = vector.shape_cast %239 : vector<4xf32> to vector<4x1xf32>
    %cst_62 = arith.constant 2.560000e+02 : f32
    %241 = vector.broadcast %cst_62 : f32 to vector<4x1xf32>
    %242 = arith.divf %240, %241 : vector<4x1xf32>
    %243 = vector.broadcast %235 : vector<4x1xf32> to vector<4x256xf32>
    %244 = arith.subf %231, %243 : vector<4x256xf32>
    %cst_63 = arith.constant 9.99999974E-6 : f32
    %245 = vector.broadcast %cst_63 : f32 to vector<4x1xf32>
    %246 = arith.addf %242, %245 : vector<4x1xf32>
    %247 = math.rsqrt %246 : vector<4x1xf32>
    %248 = vector.broadcast %247 : vector<4x1xf32> to vector<4x256xf32>
    %249 = arith.mulf %244, %248 : vector<4x256xf32>
    %250 = arith.mulf %224, %249 : vector<4x256xf32>
    %251 = arith.addf %223, %250 : vector<4x256xf32>
    %252 = math.tanh %251 : vector<4x256xf32>
    %c0_64 = arith.constant 0 : index
    %c0_65 = arith.constant 0 : index
    %253 = vector.load %arg6[%c0_64, %c0_65] : memref<4x36xbf16, #tpu.memory_space<vmem>>, vector<4x36xbf16>
    %c0_66 = arith.constant 0 : index
    %c0_67 = arith.constant 0 : index
    %254 = vector.load %arg7[%c0_66, %c0_67] : memref<4x1xf32, #tpu.memory_space<vmem>>, vector<4x1xf32>
    %cst_68 = arith.constant 0.000000e+00 : f32
    %255 = vector.broadcast %cst_68 : f32 to vector<4x17xf32>
    %256 = vector.extract_strided_slice %252 {offsets = [0, 0], sizes = [4, 239], strides = [1, 1]} : vector<4x256xf32> to vector<4x239xf32>
    %257 = tpu.concatenate %255, %256 in 1 : vector<4x17xf32>, vector<4x239xf32> -> vector<4x256xf32>
    %258 = vector.extract_strided_slice %162 {offsets = [0, 0], sizes = [1, 256], strides = [1, 1]} : vector<9x256xf32> to vector<1x256xf32>
    %259 = vector.broadcast %258 : vector<1x256xf32> to vector<4x256xf32>
    %260 = arith.mulf %257, %259 : vector<4x256xf32>
    %cst_69 = arith.constant 0.000000e+00 : f32
    %261 = vector.broadcast %cst_69 : f32 to vector<4x16xf32>
    %262 = vector.extract_strided_slice %252 {offsets = [0, 0], sizes = [4, 240], strides = [1, 1]} : vector<4x256xf32> to vector<4x240xf32>
    %263 = tpu.concatenate %261, %262 in 1 : vector<4x16xf32>, vector<4x240xf32> -> vector<4x256xf32>
    %264 = vector.extract_strided_slice %162 {offsets = [1, 0], sizes = [1, 256], strides = [1, 1]} : vector<9x256xf32> to vector<1x256xf32>
    %265 = vector.broadcast %264 : vector<1x256xf32> to vector<4x256xf32>
    %266 = arith.mulf %263, %265 : vector<4x256xf32>
    %cst_70 = arith.constant 0.000000e+00 : f32
    %267 = vector.broadcast %cst_70 : f32 to vector<4x15xf32>
    %268 = vector.extract_strided_slice %252 {offsets = [0, 0], sizes = [4, 241], strides = [1, 1]} : vector<4x256xf32> to vector<4x241xf32>
    %269 = tpu.concatenate %267, %268 in 1 : vector<4x15xf32>, vector<4x241xf32> -> vector<4x256xf32>
    %270 = vector.extract_strided_slice %162 {offsets = [2, 0], sizes = [1, 256], strides = [1, 1]} : vector<9x256xf32> to vector<1x256xf32>
    %271 = vector.broadcast %270 : vector<1x256xf32> to vector<4x256xf32>
    %272 = arith.mulf %269, %271 : vector<4x256xf32>
    %cst_71 = arith.constant 0.000000e+00 : f32
    %273 = vector.broadcast %cst_71 : f32 to vector<4x1xf32>
    %274 = vector.extract_strided_slice %252 {offsets = [0, 0], sizes = [4, 255], strides = [1, 1]} : vector<4x256xf32> to vector<4x255xf32>
    %275 = tpu.concatenate %273, %274 in 1 : vector<4x1xf32>, vector<4x255xf32> -> vector<4x256xf32>
    %276 = vector.extract_strided_slice %162 {offsets = [3, 0], sizes = [1, 256], strides = [1, 1]} : vector<9x256xf32> to vector<1x256xf32>
    %277 = vector.broadcast %276 : vector<1x256xf32> to vector<4x256xf32>
    %278 = arith.mulf %275, %277 : vector<4x256xf32>
    %279 = vector.extract_strided_slice %162 {offsets = [4, 0], sizes = [1, 256], strides = [1, 1]} : vector<9x256xf32> to vector<1x256xf32>
    %280 = vector.broadcast %279 : vector<1x256xf32> to vector<4x256xf32>
    %281 = arith.mulf %252, %280 : vector<4x256xf32>
    %cst_72 = arith.constant 0.000000e+00 : f32
    %282 = vector.broadcast %cst_72 : f32 to vector<4x1xf32>
    %283 = vector.extract_strided_slice %252 {offsets = [0, 1], sizes = [4, 255], strides = [1, 1]} : vector<4x256xf32> to vector<4x255xf32>
    %284 = tpu.concatenate %283, %282 in 1 : vector<4x255xf32>, vector<4x1xf32> -> vector<4x256xf32>
    %285 = vector.extract_strided_slice %162 {offsets = [5, 0], sizes = [1, 256], strides = [1, 1]} : vector<9x256xf32> to vector<1x256xf32>
    %286 = vector.broadcast %285 : vector<1x256xf32> to vector<4x256xf32>
    %287 = arith.mulf %284, %286 : vector<4x256xf32>
    %cst_73 = arith.constant 0.000000e+00 : f32
    %288 = vector.broadcast %cst_73 : f32 to vector<4x15xf32>
    %289 = vector.extract_strided_slice %252 {offsets = [0, 15], sizes = [4, 241], strides = [1, 1]} : vector<4x256xf32> to vector<4x241xf32>
    %290 = tpu.concatenate %289, %288 in 1 : vector<4x241xf32>, vector<4x15xf32> -> vector<4x256xf32>
    %291 = vector.extract_strided_slice %162 {offsets = [6, 0], sizes = [1, 256], strides = [1, 1]} : vector<9x256xf32> to vector<1x256xf32>
    %292 = vector.broadcast %291 : vector<1x256xf32> to vector<4x256xf32>
    %293 = arith.mulf %290, %292 : vector<4x256xf32>
    %cst_74 = arith.constant 0.000000e+00 : f32
    %294 = vector.broadcast %cst_74 : f32 to vector<4x16xf32>
    %295 = vector.extract_strided_slice %252 {offsets = [0, 16], sizes = [4, 240], strides = [1, 1]} : vector<4x256xf32> to vector<4x240xf32>
    %296 = tpu.concatenate %295, %294 in 1 : vector<4x240xf32>, vector<4x16xf32> -> vector<4x256xf32>
    %297 = vector.extract_strided_slice %162 {offsets = [7, 0], sizes = [1, 256], strides = [1, 1]} : vector<9x256xf32> to vector<1x256xf32>
    %298 = vector.broadcast %297 : vector<1x256xf32> to vector<4x256xf32>
    %299 = arith.mulf %296, %298 : vector<4x256xf32>
    %cst_75 = arith.constant 0.000000e+00 : f32
    %300 = vector.broadcast %cst_75 : f32 to vector<4x17xf32>
    %301 = vector.extract_strided_slice %252 {offsets = [0, 17], sizes = [4, 239], strides = [1, 1]} : vector<4x256xf32> to vector<4x239xf32>
    %302 = tpu.concatenate %301, %300 in 1 : vector<4x239xf32>, vector<4x17xf32> -> vector<4x256xf32>
    %303 = vector.extract_strided_slice %162 {offsets = [8, 0], sizes = [1, 256], strides = [1, 1]} : vector<9x256xf32> to vector<1x256xf32>
    %304 = vector.broadcast %303 : vector<1x256xf32> to vector<4x256xf32>
    %305 = arith.mulf %302, %304 : vector<4x256xf32>
    %306 = tpu.concatenate %260, %266, %272, %278, %281, %287, %293, %299, %305 in 0 : vector<4x256xf32>, vector<4x256xf32>, vector<4x256xf32>, vector<4x256xf32>, vector<4x256xf32>, vector<4x256xf32>, vector<4x256xf32>, vector<4x256xf32>, vector<4x256xf32> -> vector<36x256xf32>
    %307 = arith.truncf %306 : vector<36x256xf32> to vector<36x256xbf16>
    %cst_76 = arith.constant dense<0.000000e+00> : vector<4x256xf32>
    %308 = tpu.matmul %253, %307, %cst_76 {dimension_numbers = #tpu.dot_dimension_numbers<[1], [0], [0], [1], [0, 0, 1, 1], [], []>} : vector<4x36xbf16>, vector<36x256xbf16>, vector<4x256xf32> -> vector<4x256xf32>
    %309 = vector.broadcast %254 : vector<4x1xf32> to vector<4x256xf32>
    %310 = arith.addf %308, %309 : vector<4x256xf32>
    %311 = vector.extract_strided_slice %161 {offsets = [8, 0], sizes = [4, 256], strides = [1, 1]} : vector<16x256xf32> to vector<4x256xf32>
    %312 = vector.extract_strided_slice %161 {offsets = [12, 0], sizes = [4, 256], strides = [1, 1]} : vector<16x256xf32> to vector<4x256xf32>
    %c1 = arith.constant 1 : index
    %c0_77 = arith.constant 0 : index
    %c0_78 = arith.constant 0 : index
    %313 = vector.load %arg3[%c1, %c0_77, %c0_78] : memref<2x4x256xf32, #tpu.memory_space<vmem>>, vector<1x4x256xf32>
    %314 = vector.shape_cast %313 : vector<1x4x256xf32> to vector<4x256xf32>
    %c1_79 = arith.constant 1 : index
    %c0_80 = arith.constant 0 : index
    %c0_81 = arith.constant 0 : index
    %315 = vector.load %arg11[%c1_79, %c0_80, %c0_81] : memref<2x4x1xf32, #tpu.memory_space<vmem>>, vector<1x4x1xf32>
    %316 = vector.shape_cast %315 : vector<1x4x1xf32> to vector<4x1xf32>
    %317 = vector.broadcast %316 : vector<4x1xf32> to vector<4x256xf32>
    %318 = arith.mulf %317, %314 : vector<4x256xf32>
    %319 = arith.addf %310, %318 : vector<4x256xf32>
    %cst_82 = arith.constant dense<0.000000e+00> : vector<4xf32>
    %320 = vector.multi_reduction <add>, %319, %cst_82 [1] : vector<4x256xf32> to vector<4xf32>
    %321 = vector.shape_cast %320 : vector<4xf32> to vector<4x1xf32>
    %cst_83 = arith.constant 2.560000e+02 : f32
    %322 = vector.broadcast %cst_83 : f32 to vector<4x1xf32>
    %323 = arith.divf %321, %322 : vector<4x1xf32>
    %324 = vector.broadcast %323 : vector<4x1xf32> to vector<4x256xf32>
    %325 = arith.subf %319, %324 : vector<4x256xf32>
    %326 = arith.mulf %325, %325 : vector<4x256xf32>
    %cst_84 = arith.constant dense<0.000000e+00> : vector<4xf32>
    %327 = vector.multi_reduction <add>, %326, %cst_84 [1] : vector<4x256xf32> to vector<4xf32>
    %328 = vector.shape_cast %327 : vector<4xf32> to vector<4x1xf32>
    %cst_85 = arith.constant 2.560000e+02 : f32
    %329 = vector.broadcast %cst_85 : f32 to vector<4x1xf32>
    %330 = arith.divf %328, %329 : vector<4x1xf32>
    %331 = vector.broadcast %323 : vector<4x1xf32> to vector<4x256xf32>
    %332 = arith.subf %319, %331 : vector<4x256xf32>
    %cst_86 = arith.constant 9.99999974E-6 : f32
    %333 = vector.broadcast %cst_86 : f32 to vector<4x1xf32>
    %334 = arith.addf %330, %333 : vector<4x1xf32>
    %335 = math.rsqrt %334 : vector<4x1xf32>
    %336 = vector.broadcast %335 : vector<4x1xf32> to vector<4x256xf32>
    %337 = arith.mulf %332, %336 : vector<4x256xf32>
    %338 = arith.mulf %312, %337 : vector<4x256xf32>
    %339 = arith.addf %311, %338 : vector<4x256xf32>
    %340 = math.tanh %339 : vector<4x256xf32>
    %c0_87 = arith.constant 0 : index
    %c0_88 = arith.constant 0 : index
    %c0_89 = arith.constant 0 : index
    %341 = vector.load %arg14[%c0_87, %c0_88, %c0_89] : memref<1x4x256xf32, #tpu.memory_space<vmem>>, vector<1x4x256xf32>
    %342 = vector.shape_cast %341 : vector<1x4x256xf32> to vector<4x256xf32>
    %343 = vector.shape_cast %340 : vector<4x256xf32> to vector<1x4x256xf32>
    tpu.vector_store %arg14[%c0_87, %c0_88, %c0_89], %343 {strides = array<i32>} : memref<1x4x256xf32, #tpu.memory_space<vmem>>, vector<1x4x256xf32>,
    return
  }
  func.func @transform_0(%arg0: i32) -> (i32, i32, i32) {
    %c0_i32 = arith.constant 0 : i32
    %c0_i32_0 = arith.constant 0 : i32
    %c0_i32_1 = arith.constant 0 : i32
    return %arg0, %c0_i32, %c0_i32_0 : i32, i32, i32
  }
  func.func @transform_1(%arg0: i32) -> (i32, i32, i32) {
    %c0_i32 = arith.constant 0 : i32
    %c0_i32_0 = arith.constant 0 : i32
    %c0_i32_1 = arith.constant 0 : i32
    return %arg0, %c0_i32, %c0_i32_0 : i32, i32, i32
  }
  func.func @transform_2(%arg0: i32) -> (i32, i32, i32) {
    %c0_i32 = arith.constant 0 : i32
    %c0_i32_0 = arith.constant 0 : i32
    %c0_i32_1 = arith.constant 0 : i32
    %c0_i32_2 = arith.constant 0 : i32
    return %c0_i32, %c0_i32_0, %c0_i32_1 : i32, i32, i32
  }
  func.func @transform_3(%arg0: i32) -> (i32, i32) {
    %c0_i32 = arith.constant 0 : i32
    %c0_i32_0 = arith.constant 0 : i32
    %c0_i32_1 = arith.constant 0 : i32
    return %c0_i32, %c0_i32_0 : i32, i32
  }
  func.func @transform_4(%arg0: i32) -> (i32, i32) {
    %c0_i32 = arith.constant 0 : i32
    %c0_i32_0 = arith.constant 0 : i32
    %c0_i32_1 = arith.constant 0 : i32
    return %c0_i32, %c0_i32_0 : i32, i32
  }
  func.func @transform_5(%arg0: i32) -> (i32, i32) {
    %c0_i32 = arith.constant 0 : i32
    %c0_i32_0 = arith.constant 0 : i32
    %c0_i32_1 = arith.constant 0 : i32
    return %c0_i32, %c0_i32_0 : i32, i32
  }
  func.func @transform_6(%arg0: i32) -> (i32, i32) {
    %c0_i32 = arith.constant 0 : i32
    %c0_i32_0 = arith.constant 0 : i32
    %c0_i32_1 = arith.constant 0 : i32
    return %c0_i32, %c0_i32_0 : i32, i32
  }
  func.func @transform_7(%arg0: i32) -> (i32, i32) {
    %c0_i32 = arith.constant 0 : i32
    %c0_i32_0 = arith.constant 0 : i32
    %c0_i32_1 = arith.constant 0 : i32
    return %c0_i32, %c0_i32_0 : i32, i32
  }
  func.func @transform_8(%arg0: i32) -> (i32, i32) {
    %c0_i32 = arith.constant 0 : i32
    %c0_i32_0 = arith.constant 0 : i32
    %c0_i32_1 = arith.constant 0 : i32
    return %c0_i32, %c0_i32_0 : i32, i32
  }
  func.func @transform_9(%arg0: i32) -> (i32, i32) {
    %c0_i32 = arith.constant 0 : i32
    %c0_i32_0 = arith.constant 0 : i32
    %c0_i32_1 = arith.constant 0 : i32
    return %c0_i32, %c0_i32_0 : i32, i32
  }
  func.func @transform_10(%arg0: i32) -> (i32, i32, i32) {
    %c0_i32 = arith.constant 0 : i32
    %c0_i32_0 = arith.constant 0 : i32
    %c0_i32_1 = arith.constant 0 : i32
    %c0_i32_2 = arith.constant 0 : i32
    return %c0_i32, %c0_i32_0, %c0_i32_1 : i32, i32, i32
  }
  func.func @transform_11(%arg0: i32) -> (i32, i32) {
    %c0_i32 = arith.constant 0 : i32
    %c0_i32_0 = arith.constant 0 : i32
    %c0_i32_1 = arith.constant 0 : i32
    return %c0_i32, %c0_i32_0 : i32, i32
  }
  func.func @transform_12(%arg0: i32) -> (i32, i32) {
    %c0_i32 = arith.constant 0 : i32
    %c0_i32_0 = arith.constant 0 : i32
    %c0_i32_1 = arith.constant 0 : i32
    return %c0_i32, %c0_i32_0 : i32, i32
  }
  func.func @transform_13(%arg0: i32) -> (i32, i32, i32) {
    %c0_i32 = arith.constant 0 : i32
    %c0_i32_0 = arith.constant 0 : i32
    %c0_i32_1 = arith.constant 0 : i32
    return %arg0, %c0_i32, %c0_i32_0 : i32, i32, i32
  }
}

</mosaic_0001>

<llo_original>
// kernel: stylegan_block.1
$region0: #{stylegan_block.1}
  #allocation0 [shape = 'u32[]', space=smem, size = 0x4, offset = 0x4, fixed_abs, tag = 'smem constant byte address 0x4 - core index']
  #allocation1 [shape = 'u32[144,128]{1,0:T(1,128)}', space=vmem, size = 0x12000, scoped, tag = 'internal scratch']
  %s0 = inlined_call_operand.vmem [shape: f32[2,4,256], index: 0, kind: input, shape index: {}]
  %s1 = inlined_call_operand.vmem [shape: f32[2,4,64], index: 1, kind: input, shape index: {}]
  %s2 = inlined_call_operand.vmem [shape: f32[2,4,256], index: 2, kind: input, shape index: {}]
  %s3 = inlined_call_operand.vmem [shape: bf16[4,36], index: 3, kind: input, shape index: {}]
  %s4 = inlined_call_operand.vmem [shape: f32[4,1], index: 4, kind: input, shape index: {}]
  %s5 = inlined_call_operand.vmem [shape: bf16[4,36], index: 5, kind: input, shape index: {}]
  %s6 = inlined_call_operand.vmem [shape: f32[4,1], index: 6, kind: input, shape index: {}]
  %s7 = inlined_call_operand.vmem [shape: bf16[16,100], index: 7, kind: input, shape index: {}]
  %s8 = inlined_call_operand.vmem [shape: f32[16,1], index: 8, kind: input, shape index: {}]
  %s9 = inlined_call_operand.vmem [shape: bf16[64,256], index: 9, kind: input, shape index: {}]
  %s10 = inlined_call_operand.vmem [shape: f32[2,4,1], index: 10, kind: input, shape index: {}]
  %s11 = inlined_call_operand.vmem [shape: f32[9,256], index: 11, kind: input, shape index: {}]
  %s12 = inlined_call_operand.vmem [shape: f32[25,64], index: 12, kind: input, shape index: {}]
  %s13 = inlined_call_operand.vmem [shape: f32[2,4,256], index: 13, kind: output, shape index: {}]
  %s14 = sld [smem:[#allocation0]]
  $region85: #{stylegan_block.1} parent=0
    _
  %s16 = ssub.s32 1, %s14
  %s17 = scalar_select 0, %s16, %s14
  loop: start=0, step=1, limit=4
  $region2: #{stylegan_block.1} parent=0 // loop_pre_header
    _
  $region3: #{stylegan_block.1} parent=0 // loop_header
    %s19 = sphi 0, %s23
    %p20 = scmp.ge.s32.totalorder %s19, 4
    %s29 = sphi 0, %s31
    %s32 = sphi 0, %s29
    %s33 = sphi 0, %s32
    %s49 = sphi 0, %s33
    %s55 = sphi 0, %s57
    %s58 = sphi 0, %s55
    %s59 = sphi 0, %s58
    %s75 = sphi 0, %s59
    %s79 = sphi 0, %s79
    %s81 = sphi 0, %s79
    %s82 = sphi 0, %s81
    %s96 = sphi 0, %s82
    %s100 = sphi 0, %s100
    %s102 = sphi 0, %s100
    %s103 = sphi 0, %s102
    %s117 = sphi 0, %s103
    %s121 = sphi 0, %s121
    %s123 = sphi 0, %s121
    %s124 = sphi 0, %s123
    %s138 = sphi 0, %s124
    %s142 = sphi 0, %s142
    %s144 = sphi 0, %s142
    %s145 = sphi 0, %s144
    %s159 = sphi 0, %s145
    %s163 = sphi 0, %s163
    %s165 = sphi 0, %s163
    %s166 = sphi 0, %s165
    %s180 = sphi 0, %s166
    %s184 = sphi 0, %s184
    %s186 = sphi 0, %s184
    %s187 = sphi 0, %s186
    %s201 = sphi 0, %s187
    %s205 = sphi 0, %s205
    %s207 = sphi 0, %s205
    %s208 = sphi 0, %s207
    %s222 = sphi 0, %s208
    %s226 = sphi 0, %s226
    %s228 = sphi 0, %s226
    %s229 = sphi 0, %s228
    %s243 = sphi 0, %s229
    %s247 = sphi 0, %s247
    %s249 = sphi 0, %s247
    %s250 = sphi 0, %s249
    %s264 = sphi 0, %s250
    %s268 = sphi 0, %s268
    %s270 = sphi 0, %s268
    %s271 = sphi 0, %s270
    %s285 = sphi 0, %s271
    %s289 = sphi 0, %s289
    %s291 = sphi 0, %s289
    %s292 = sphi 0, %s291
    %s306 = sphi 0, %s292
    %s312 = sphi 0, %s314
    %s315 = sphi 0, %s312
    %s316 = sphi 0, %s315
    %s332 = sphi 0, %s316
  $region4: #{stylegan_block.1} parent=0 // loop_header_branch
    %22 = sbr.rel (%p20) target = $region8
  $region5: #{stylegan_block.1} parent=0 // loop_body
    %s24 = ssub.s32 %s19, 1
    %s25 = ssub.s32 %s19, 2
    %s26 = sadd.s32 %s19, 1
    %s27 = ssub.s32 %s19, %s26
    %p28 = scmp.eq.s32.totalorder %s27, 0
    %s30 = sadd.s32 %s29, 1
    %s31 = scalar_select %p28, %s29, %s30
    %p34 = pneg %p28
    %p35 = scmp.eq.s32.totalorder %s19, 1
    %p36 = por %p34, %p35
    %p37 = scmp.ne.s32.totalorder %s29, %s32
    %p38 = scmp.eq.s32.totalorder %s19, 0
    %p39 = por %p37, %p38
    %p40 = scmp.ne.s32.totalorder %s29, %s32
    %p41 = scmp.eq.s32.totalorder %s24, 1
    %p42 = por %p40, %p41
    %p43 = scmp.ne.s32.totalorder %s32, %s33
    %p44 = scmp.eq.s32.totalorder %s24, 0
    %p45 = por %p43, %p44
    %p46 = scmp.ne.s32.totalorder %s32, %s33
    %p47 = scmp.eq.s32.totalorder %s25, 1
    %p48 = por %p46, %p47
    %p50 = scmp.ne.s32.totalorder %s33, %s49
    %p51 = scmp.eq.s32.totalorder %s25, 0
    %p52 = por %p50, %p51
    %s53 = ssub.s32 %s19, %s26
    %p54 = scmp.eq.s32.totalorder %s53, 0
    %s56 = sadd.s32 %s55, 1
    %s57 = scalar_select %p54, %s55, %s56
    %p60 = pneg %p54
    %p61 = scmp.eq.s32.totalorder %s19, 1
    %p62 = por %p60, %p61
    %p63 = scmp.ne.s32.totalorder %s55, %s58
    %p64 = scmp.eq.s32.totalorder %s19, 0
    %p65 = por %p63, %p64
    %p66 = scmp.ne.s32.totalorder %s55, %s58
    %p67 = scmp.eq.s32.totalorder %s24, 1
    %p68 = por %p66, %p67
    %p69 = scmp.ne.s32.totalorder %s58, %s59
    %p70 = scmp.eq.s32.totalorder %s24, 0
    %p71 = por %p69, %p70
    %p72 = scmp.ne.s32.totalorder %s58, %s59
    %p73 = scmp.eq.s32.totalorder %s25, 1
    %p74 = por %p72, %p73
    %p76 = scmp.ne.s32.totalorder %s59, %s75
    %p77 = scmp.eq.s32.totalorder %s25, 0
    %p78 = por %p76, %p77
    %s80 = sadd.s32 %s79, 1
    %p83 = scmp.eq.s32.totalorder %s19, 1
    %p84 = scmp.ne.s32.totalorder %s79, %s81
    %p85 = scmp.eq.s32.totalorder %s19, 0
    %p86 = por %p84, %p85
    %p87 = scmp.ne.s32.totalorder %s79, %s81
    %p88 = scmp.eq.s32.totalorder %s24, 1
    %p89 = por %p87, %p88
    %p90 = scmp.ne.s32.totalorder %s81, %s82
    %p91 = scmp.eq.s32.totalorder %s24, 0
    %p92 = por %p90, %p91
    %p93 = scmp.ne.s32.totalorder %s81, %s82
    %p94 = scmp.eq.s32.totalorder %s25, 1
    %p95 = por %p93, %p94
    %p97 = scmp.ne.s32.totalorder %s82, %s96
    %p98 = scmp.eq.s32.totalorder %s25, 0
    %p99 = por %p97, %p98
    %s101 = sadd.s32 %s100, 1
    %p104 = scmp.eq.s32.totalorder %s19, 1
    %p105 = scmp.ne.s32.totalorder %s100, %s102
    %p106 = scmp.eq.s32.totalorder %s19, 0
    %p107 = por %p105, %p106
    %p108 = scmp.ne.s32.totalorder %s100, %s102
    %p109 = scmp.eq.s32.totalorder %s24, 1
    %p110 = por %p108, %p109
    %p111 = scmp.ne.s32.totalorder %s102, %s103
    %p112 = scmp.eq.s32.totalorder %s24, 0
    %p113 = por %p111, %p112
    %p114 = scmp.ne.s32.totalorder %s102, %s103
    %p115 = scmp.eq.s32.totalorder %s25, 1
    %p116 = por %p114, %p115
    %p118 = scmp.ne.s32.totalorder %s103, %s117
    %p119 = scmp.eq.s32.totalorder %s25, 0
    %p120 = por %p118, %p119
    %s122 = sadd.s32 %s121, 1
    %p125 = scmp.eq.s32.totalorder %s19, 1
    %p126 = scmp.ne.s32.totalorder %s121, %s123
    %p127 = scmp.eq.s32.totalorder %s19, 0
    %p128 = por %p126, %p127
    %p129 = scmp.ne.s32.totalorder %s121, %s123
    %p130 = scmp.eq.s32.totalorder %s24, 1
    %p131 = por %p129, %p130
    %p132 = scmp.ne.s32.totalorder %s123, %s124
    %p133 = scmp.eq.s32.totalorder %s24, 0
    %p134 = por %p132, %p133
    %p135 = scmp.ne.s32.totalorder %s123, %s124
    %p136 = scmp.eq.s32.totalorder %s25, 1
    %p137 = por %p135, %p136
    %p139 = scmp.ne.s32.totalorder %s124, %s138
    %p140 = scmp.eq.s32.totalorder %s25, 0
    %p141 = por %p139, %p140
    %s143 = sadd.s32 %s142, 1
    %p146 = scmp.eq.s32.totalorder %s19, 1
    %p147 = scmp.ne.s32.totalorder %s142, %s144
    %p148 = scmp.eq.s32.totalorder %s19, 0
    %p149 = por %p147, %p148
    %p150 = scmp.ne.s32.totalorder %s142, %s144
    %p151 = scmp.eq.s32.totalorder %s24, 1
    %p152 = por %p150, %p151
    %p153 = scmp.ne.s32.totalorder %s144, %s145
    %p154 = scmp.eq.s32.totalorder %s24, 0
    %p155 = por %p153, %p154
    %p156 = scmp.ne.s32.totalorder %s144, %s145
    %p157 = scmp.eq.s32.totalorder %s25, 1
    %p158 = por %p156, %p157
    %p160 = scmp.ne.s32.totalorder %s145, %s159
    %p161 = scmp.eq.s32.totalorder %s25, 0
    %p162 = por %p160, %p161
    %s164 = sadd.s32 %s163, 1
    %p167 = scmp.eq.s32.totalorder %s19, 1
    %p168 = scmp.ne.s32.totalorder %s163, %s165
    %p169 = scmp.eq.s32.totalorder %s19, 0
    %p170 = por %p168, %p169
    %p171 = scmp.ne.s32.totalorder %s163, %s165
    %p172 = scmp.eq.s32.totalorder %s24, 1
    %p173 = por %p171, %p172
    %p174 = scmp.ne.s32.totalorder %s165, %s166
    %p175 = scmp.eq.s32.totalorder %s24, 0
    %p176 = por %p174, %p175
    %p177 = scmp.ne.s32.totalorder %s165, %s166
    %p178 = scmp.eq.s32.totalorder %s25, 1
    %p179 = por %p177, %p178
    %p181 = scmp.ne.s32.totalorder %s166, %s180
    %p182 = scmp.eq.s32.totalorder %s25, 0
    %p183 = por %p181, %p182
    %s185 = sadd.s32 %s184, 1
    %p188 = scmp.eq.s32.totalorder %s19, 1
    %p189 = scmp.ne.s32.totalorder %s184, %s186
    %p190 = scmp.eq.s32.totalorder %s19, 0
    %p191 = por %p189, %p190
    %p192 = scmp.ne.s32.totalorder %s184, %s186
    %p193 = scmp.eq.s32.totalorder %s24, 1
    %p194 = por %p192, %p193
    %p195 = scmp.ne.s32.totalorder %s186, %s187
    %p196 = scmp.eq.s32.totalorder %s24, 0
    %p197 = por %p195, %p196
    %p198 = scmp.ne.s32.totalorder %s186, %s187
    %p199 = scmp.eq.s32.totalorder %s25, 1
    %p200 = por %p198, %p199
    %p202 = scmp.ne.s32.totalorder %s187, %s201
    %p203 = scmp.eq.s32.totalorder %s25, 0
    %p204 = por %p202, %p203
    %s206 = sadd.s32 %s205, 1
    %p209 = scmp.eq.s32.totalorder %s19, 1
    %p210 = scmp.ne.s32.totalorder %s205, %s207
    %p211 = scmp.eq.s32.totalorder %s19, 0
    %p212 = por %p210, %p211
    %p213 = scmp.ne.s32.totalorder %s205, %s207
    %p214 = scmp.eq.s32.totalorder %s24, 1
    %p215 = por %p213, %p214
    %p216 = scmp.ne.s32.totalorder %s207, %s208
    %p217 = scmp.eq.s32.totalorder %s24, 0
    %p218 = por %p216, %p217
    %p219 = scmp.ne.s32.totalorder %s207, %s208
    %p220 = scmp.eq.s32.totalorder %s25, 1
    %p221 = por %p219, %p220
    %p223 = scmp.ne.s32.totalorder %s208, %s222
    %p224 = scmp.eq.s32.totalorder %s25, 0
    %p225 = por %p223, %p224
    %s227 = sadd.s32 %s226, 1
    %p230 = scmp.eq.s32.totalorder %s19, 1
    %p231 = scmp.ne.s32.totalorder %s226, %s228
    %p232 = scmp.eq.s32.totalorder %s19, 0
    %p233 = por %p231, %p232
    %p234 = scmp.ne.s32.totalorder %s226, %s228
    %p235 = scmp.eq.s32.totalorder %s24, 1
    %p236 = por %p234, %p235
    %p237 = scmp.ne.s32.totalorder %s228, %s229
    %p238 = scmp.eq.s32.totalorder %s24, 0
    %p239 = por %p237, %p238
    %p240 = scmp.ne.s32.totalorder %s228, %s229
    %p241 = scmp.eq.s32.totalorder %s25, 1
    %p242 = por %p240, %p241
    %p244 = scmp.ne.s32.totalorder %s229, %s243
    %p245 = scmp.eq.s32.totalorder %s25, 0
    %p246 = por %p244, %p245
    %s248 = sadd.s32 %s247, 1
    %p251 = scmp.eq.s32.totalorder %s19, 1
    %p252 = scmp.ne.s32.totalorder %s247, %s249
    %p253 = scmp.eq.s32.totalorder %s19, 0
    %p254 = por %p252, %p253
    %p255 = scmp.ne.s32.totalorder %s247, %s249
    %p256 = scmp.eq.s32.totalorder %s24, 1
    %p257 = por %p255, %p256
    %p258 = scmp.ne.s32.totalorder %s249, %s250
    %p259 = scmp.eq.s32.totalorder %s24, 0
    %p260 = por %p258, %p259
    %p261 = scmp.ne.s32.totalorder %s249, %s250
    %p262 = scmp.eq.s32.totalorder %s25, 1
    %p263 = por %p261, %p262
    %p265 = scmp.ne.s32.totalorder %s250, %s264
    %p266 = scmp.eq.s32.totalorder %s25, 0
    %p267 = por %p265, %p266
    %s269 = sadd.s32 %s268, 1
    %p272 = scmp.eq.s32.totalorder %s19, 1
    %p273 = scmp.ne.s32.totalorder %s268, %s270
    %p274 = scmp.eq.s32.totalorder %s19, 0
    %p275 = por %p273, %p274
    %p276 = scmp.ne.s32.totalorder %s268, %s270
    %p277 = scmp.eq.s32.totalorder %s24, 1
    %p278 = por %p276, %p277
    %p279 = scmp.ne.s32.totalorder %s270, %s271
    %p280 = scmp.eq.s32.totalorder %s24, 0
    %p281 = por %p279, %p280
    %p282 = scmp.ne.s32.totalorder %s270, %s271
    %p283 = scmp.eq.s32.totalorder %s25, 1
    %p284 = por %p282, %p283
    %p286 = scmp.ne.s32.totalorder %s271, %s285
    %p287 = scmp.eq.s32.totalorder %s25, 0
    %p288 = por %p286, %p287
    %s290 = sadd.s32 %s289, 1
    %p293 = scmp.eq.s32.totalorder %s19, 1
    %p294 = scmp.ne.s32.totalorder %s289, %s291
    %p295 = scmp.eq.s32.totalorder %s19, 0
    %p296 = por %p294, %p295
    %p297 = scmp.ne.s32.totalorder %s289, %s291
    %p298 = scmp.eq.s32.totalorder %s24, 1
    %p299 = por %p297, %p298
    %p300 = scmp.ne.s32.totalorder %s291, %s292
    %p301 = scmp.eq.s32.totalorder %s24, 0
    %p302 = por %p300, %p301
    %p303 = scmp.ne.s32.totalorder %s291, %s292
    %p304 = scmp.eq.s32.totalorder %s25, 1
    %p305 = por %p303, %p304
    %p307 = scmp.ne.s32.totalorder %s292, %s306
    %p308 = scmp.eq.s32.totalorder %s25, 0
    %p309 = por %p307, %p308
    %s310 = ssub.s32 %s19, %s26
    %p311 = scmp.eq.s32.totalorder %s310, 0
    %s313 = sadd.s32 %s312, 1
    %s314 = scalar_select %p311, %s312, %s313
    %p317 = pneg %p311
    %p318 = scmp.eq.s32.totalorder %s19, 1
    %p319 = por %p317, %p318
    %p320 = scmp.ne.s32.totalorder %s312, %s315
    %p321 = scmp.eq.s32.totalorder %s19, 0
    %p322 = por %p320, %p321
    %p323 = scmp.ne.s32.totalorder %s312, %s315
    %p324 = scmp.eq.s32.totalorder %s24, 1
    %p325 = por %p323, %p324
    %p326 = scmp.ne.s32.totalorder %s315, %s316
    %p327 = scmp.eq.s32.totalorder %s24, 0
    %p328 = por %p326, %p327
    %p329 = scmp.ne.s32.totalorder %s315, %s316
    %p330 = scmp.eq.s32.totalorder %s25, 1
    %p331 = por %p329, %p330
    %p333 = scmp.ne.s32.totalorder %s316, %s332
    %p334 = scmp.eq.s32.totalorder %s25, 0
    %p335 = por %p333, %p334
    %p336 = scmp.le.s32.totalorder 1, %s19
    %p337 = scmp.lt.s32.totalorder %s19, 3
    %p338 = pnand %p336, %p337
    %p339 = pneg %p338
    // Predicated region
    $region9: #{stylegan_block.1} parent=5 // pred_check
      _
    $region10: #{stylegan_block.1} parent=5 // pred_check_branch
      %341 = sbr.rel (%p338) target = $region12
    $region11: #{stylegan_block.1} parent=5 // pred_region
      %s342 = ssub.s32 %s19, 1
      // Predicated region
      $region13: #{stylegan_block.1} parent=11 // pred_check
        %p343 = pneg %p92
      $region14: #{stylegan_block.1} parent=11 // pred_check_branch
        %345 = sbr.rel (%p343) target = $region16
      $region15: #{stylegan_block.1} parent=11 // pred_region
        _
      $region16: #{stylegan_block.1} parent=11 // pred_fallthru
        _
      // Predicated region
      $region17: #{stylegan_block.1} parent=11 // pred_check
        %p346 = pneg %p113
      $region18: #{stylegan_block.1} parent=11 // pred_check_branch
        %348 = sbr.rel (%p346) target = $region20
      $region19: #{stylegan_block.1} parent=11 // pred_region
        _
      $region20: #{stylegan_block.1} parent=11 // pred_fallthru
        _
      // Predicated region
      $region21: #{stylegan_block.1} parent=11 // pred_check
        %p349 = pneg %p134
      $region22: #{stylegan_block.1} parent=11 // pred_check_branch
        %351 = sbr.rel (%p349) target = $region24
      $region23: #{stylegan_block.1} parent=11 // pred_region
        _
      $region24: #{stylegan_block.1} parent=11 // pred_fallthru
        _
      // Predicated region
      $region25: #{stylegan_block.1} parent=11 // pred_check
        %p352 = pneg %p155
      $region26: #{stylegan_block.1} parent=11 // pred_check_branch
        %354 = sbr.rel (%p352) target = $region28
      $region27: #{stylegan_block.1} parent=11 // pred_region
        _
      $region28: #{stylegan_block.1} parent=11 // pred_fallthru
        _
      // Predicated region
      $region29: #{stylegan_block.1} parent=11 // pred_check
        %p355 = pneg %p176
      $region30: #{stylegan_block.1} parent=11 // pred_check_branch
        %357 = sbr.rel (%p355) target = $region32
      $region31: #{stylegan_block.1} parent=11 // pred_region
        _
      $region32: #{stylegan_block.1} parent=11 // pred_fallthru
        _
      // Predicated region
      $region33: #{stylegan_block.1} parent=11 // pred_check
        %p358 = pneg %p197
      $region34: #{stylegan_block.1} parent=11 // pred_check_branch
        %360 = sbr.rel (%p358) target = $region36
      $region35: #{stylegan_block.1} parent=11 // pred_region
        _
      $region36: #{stylegan_block.1} parent=11 // pred_fallthru
        _
      // Predicated region
      $region37: #{stylegan_block.1} parent=11 // pred_check
        %p361 = pneg %p218
      $region38: #{stylegan_block.1} parent=11 // pred_check_branch
        %363 = sbr.rel (%p361) target = $region40
      $region39: #{stylegan_block.1} parent=11 // pred_region
        _
      $region40: #{stylegan_block.1} parent=11 // pred_fallthru
        _
      // Predicated region
      $region41: #{stylegan_block.1} parent=11 // pred_check
        %p364 = pneg %p239
      $region42: #{stylegan_block.1} parent=11 // pred_check_branch
        %366 = sbr.rel (%p364) target = $region44
      $region43: #{stylegan_block.1} parent=11 // pred_region
        _
      $region44: #{stylegan_block.1} parent=11 // pred_fallthru
        _
      // Predicated region
      $region45: #{stylegan_block.1} parent=11 // pred_check
        %p367 = pneg %p260
      $region46: #{stylegan_block.1} parent=11 // pred_check_branch
        %369 = sbr.rel (%p367) target = $region48
      $region47: #{stylegan_block.1} parent=11 // pred_region
        _
      $region48: #{stylegan_block.1} parent=11 // pred_fallthru
        _
      // Predicated region
      $region49: #{stylegan_block.1} parent=11 // pred_check
        %p370 = pneg %p281
      $region50: #{stylegan_block.1} parent=11 // pred_check_branch
        %372 = sbr.rel (%p370) target = $region52
      $region51: #{stylegan_block.1} parent=11 // pred_region
        _
      $region52: #{stylegan_block.1} parent=11 // pred_fallthru
        _
      // Predicated region
      $region53: #{stylegan_block.1} parent=11 // pred_check
        %p373 = pneg %p302
      $region54: #{stylegan_block.1} parent=11 // pred_check_branch
        %375 = sbr.rel (%p373) target = $region56
      $region55: #{stylegan_block.1} parent=11 // pred_region
        _
      $region56: #{stylegan_block.1} parent=11 // pred_fallthru
        _
    $region12: #{stylegan_block.1} parent=5 // pred_fallthru
      _
    %p376 = scmp.lt.s32.totalorder %s19, 2
    // Predicated region
    $region57: #{stylegan_block.1} parent=5 // pred_check
      %p377 = pneg %p376
    $region58: #{stylegan_block.1} parent=5 // pred_check_branch
      %379 = sbr.rel (%p377) target = $region60
    $region59: #{stylegan_block.1} parent=5 // pred_region
      // Predicated region
      $region61: #{stylegan_block.1} parent=59 // pred_check
        %p380 = pneg %p39
      $region62: #{stylegan_block.1} parent=59 // pred_check_branch
        %382 = sbr.rel (%p380) target = $region64
      $region63: #{stylegan_block.1} parent=59 // pred_region
        %p383 = scmp.lt.s32.totalorder %s19, 1
        %s384 = scalar_select %p383, %s19, 1
        %s385 = smul.addr %s384, 2
        %s386 = smul.addr %s385, 4
        %s387 = scalar_lea.vmem %s0, %s386
      $region64: #{stylegan_block.1} parent=59 // pred_fallthru
        _
      // Predicated region
      $region65: #{stylegan_block.1} parent=59 // pred_check
        %p388 = pneg %p65
      $region66: #{stylegan_block.1} parent=59 // pred_check_branch
        %390 = sbr.rel (%p388) target = $region68
      $region67: #{stylegan_block.1} parent=59 // pred_region
        %p391 = scmp.lt.s32.totalorder %s19, 1
        %s392 = scalar_select %p391, %s19, 1
        %s393 = smul.addr %s392, 4
        %s394 = scalar_lea.vmem %s1, %s393
      $region68: #{stylegan_block.1} parent=59 // pred_fallthru
        _
    $region60: #{stylegan_block.1} parent=5 // pred_fallthru
      _
    %p395 = scmp.le.s32.totalorder 1, %s19
    %p396 = scmp.lt.s32.totalorder %s19, 3
    %p397 = pnand %p395, %p396
    %p398 = pneg %p397
    // Predicated region
    $region69: #{stylegan_block.1} parent=5 // pred_check
      _
    $region70: #{stylegan_block.1} parent=5 // pred_check_branch
      %400 = sbr.rel (%p397) target = $region72
    $region71: #{stylegan_block.1} parent=5 // pred_region
      %s401 = ssub.s32 %s19, 1
      %p402 = scmp.lt.s32.totalorder %s24, 1
      %s403 = scalar_select %p402, %s24, 1
      %s404 = smul.addr %s403, 2
      %s405 = smul.addr %s404, 4
      %s406 = scalar_lea.vmem %s0, %s405
      %p407 = pneg %p45
      %p408 = pneg %p42
      %p409 = scmp.lt.s32.totalorder %s24, 1
      %s410 = scalar_select %p409, %s24, 1
      %s411 = smul.addr %s410, 4
      %s412 = scalar_lea.vmem %s1, %s411
      %p413 = pneg %p71
      %p414 = pneg %p68
      %p415 = pneg %p92
      %p416 = pneg %p89
      %p417 = pneg %p113
      %p418 = pneg %p110
      %p419 = pneg %p134
      %p420 = pneg %p131
      %p421 = pneg %p155
      %p422 = pneg %p152
      %p423 = pneg %p176
      %p424 = pneg %p173
      %p425 = pneg %p197
      %p426 = pneg %p194
      %p427 = pneg %p218
      %p428 = pneg %p215
      %p429 = pneg %p239
      %p430 = pneg %p236
      %p431 = pneg %p260
      %p432 = pneg %p257
      %p433 = pneg %p281
      %p434 = pneg %p278
      %p435 = pneg %p302
      %p436 = pneg %p299
      %p437 = pneg %p328
      %p438 = pneg %p325
      %p439 = scmp.lt.s32.totalorder %s24, 1
      %s440 = scalar_select %p439, %s24, 1
      %s441 = smul.addr %s440, 2
      %s442 = smul.addr %s441, 4
      %s443 = scalar_lea.vmem %s13, %s442
      %p444 = scmp.lt.s32.totalorder %s24, 1
      %s445 = scalar_select %p444, %s24, 1
      %s446 = smul.addr %s445, 2
      %s447 = smul.addr %s446, 4
      %s448 = scalar_lea.vmem %s0, %s447
      %p449 = scmp.lt.s32.totalorder %s24, 1
      %s450 = scalar_select %p449, %s24, 1
      %s451 = smul.addr %s450, 4
      %s452 = scalar_lea.vmem %s1, %s451
      %p453 = scmp.lt.s32.totalorder %s24, 1
      %s454 = scalar_select %p453, %s24, 1
      %s455 = smul.addr %s454, 2
      %s456 = smul.addr %s455, 4
      %s457 = scalar_lea.vmem %s13, %s456
      %v459 = vld [vmem:[%s452] sm:$0xf]
      %v460 = vld [vmem:[%s7] sm:$0xf]
      %v461 = vld [vmem:[%s7 + $0x4] sm:$0xf]
      %v462 = vld [vmem:[%s8] sm:$0xff]
      %v463 = vld [vmem:[%s8 + $0x8] sm:$0xff]
      %v464 = vld [vmem:[%s12] sm:$0xff]
      %v465 = vld [vmem:[%s12 + $0x8] sm:$0xff]
      %v466 = vld [vmem:[%s12 + $0x10] sm:$0xff]
      %v467 = vld [vmem:[%s12 + $0x18] sm:$0x1]
      %469 = vrot.lane.b32.xlu0 %v459, 18
      %v470 = vpop.permute.xlu0 %469
      %vm472 = vcmask 146432
      %v473 = vsel %vm472, 0.0, %v470
      %v474 = vlaneseq
      %v475 = vshrl.u32 %v474, 7
      %v476 = vsub.s32 0, %v475
      %v477 = vrot.slane %v464, %v476
      %v478 = vmul.f32 %v473, %v477
      %479 = vrot.lane.b32.xlu0 %v459, 17
      %v480 = vpop.permute.xlu0 %479
      %vm482 = vcmask 138240
      %v483 = vsel %vm482, 0.0, %v480
      %v484 = vlaneseq
      %v485 = vshrl.u32 %v484, 7
      %v486 = vsub.s32 1, %v485
      %v487 = vrot.slane %v464, %v486
      %v488 = vmul.f32 %v483, %v487
      %489 = vrot.lane.b32.xlu0 %v459, 16
      %v490 = vpop.permute.xlu0 %489
      %vm492 = vcmask 130048
      %v493 = vsel %vm492, 0.0, %v490
      %v494 = vlaneseq
      %v495 = vshrl.u32 %v494, 7
      %v496 = vsub.s32 2, %v495
      %v497 = vrot.slane %v464, %v496
      %v498 = vmul.f32 %v493, %v497
      %499 = vrot.lane.b32.xlu0 %v459, 15
      %v500 = vpop.permute.xlu0 %499
      %vm502 = vcmask 121856
      %v503 = vsel %vm502, 0.0, %v500
      %v504 = vlaneseq
      %v505 = vshrl.u32 %v504, 7
      %v506 = vsub.s32 3, %v505
      %v507 = vrot.slane %v464, %v506
      %v508 = vmul.f32 %v503, %v507
      %509 = vrot.lane.b32.xlu0 %v459, 14
      %v510 = vpop.permute.xlu0 %509
      %vm512 = vcmask 113664
      %v513 = vsel %vm512, 0.0, %v510
      %v514 = vlaneseq
      %v515 = vshrl.u32 %v514, 7
      %v516 = vsub.s32 4, %v515
      %v517 = vrot.slane %v464, %v516
      %v518 = vmul.f32 %v513, %v517
      %519 = vrot.lane.b32.xlu0 %v459, 10
      %v520 = vpop.permute.xlu0 %519
      %vm522 = vcmask 80896
      %v523 = vsel %vm522, 0.0, %v520
      %v524 = vlaneseq
      %v525 = vshrl.u32 %v524, 7
      %v526 = vsub.s32 5, %v525
      %v527 = vrot.slane %v464, %v526
      %v528 = vmul.f32 %v523, %v527
      %529 = vrot.lane.b32.xlu0 %v459, 9
      %v530 = vpop.permute.xlu0 %529
      %vm532 = vcmask 72704
      %v533 = vsel %vm532, 0.0, %v530
      %v534 = vlaneseq
      %v535 = vshrl.u32 %v534, 7
      %v536 = vsub.s32 6, %v535
      %v537 = vrot.slane %v464, %v536
      %v538 = vmul.f32 %v533, %v537
      %539 = vrot.lane.b32.xlu0 %v459, 8
      %v540 = vpop.permute.xlu0 %539
      %vm542 = vcmask 64512
      %v543 = vsel %vm542, 0.0, %v540
      %v544 = vlaneseq
      %v545 = vshrl.u32 %v544, 7
      %v546 = vsub.s32 7, %v545
      %v547 = vrot.slane %v464, %v546
      %v548 = vmul.f32 %v543, %v547
      %549 = vrot.lane.b32.xlu0 %v459, 7
      %v550 = vpop.permute.xlu0 %549
      %vm552 = vcmask 56320
      %v553 = vsel %vm552, 0.0, %v550
      %v554 = vlaneseq
      %v555 = vshrl.u32 %v554, 7
      %v556 = vsub.s32 0, %v555
      %v557 = vrot.slane %v465, %v556
      %v558 = vmul.f32 %v553, %v557
      %559 = vrot.lane.b32.xlu0 %v459, 6
      %v560 = vpop.permute.xlu0 %559
      %vm562 = vcmask 48128
      %v563 = vsel %vm562, 0.0, %v560
      %v564 = vlaneseq
      %v565 = vshrl.u32 %v564, 7
      %v566 = vsub.s32 1, %v565
      %v567 = vrot.slane %v465, %v566
      %v568 = vmul.f32 %v563, %v567
      %569 = vrot.lane.b32.xlu0 %v459, 2
      %v570 = vpop.permute.xlu0 %569
      %vm572 = vcmask 15360
      %v573 = vsel %vm572, 0.0, %v570
      %v574 = vlaneseq
      %v575 = vshrl.u32 %v574, 7
      %v576 = vsub.s32 2, %v575
      %v577 = vrot.slane %v465, %v576
      %v578 = vmul.f32 %v573, %v577
      %579 = vrot.lane.b32.xlu0 %v459, 1
      %v580 = vpop.permute.xlu0 %579
      %vm582 = vcmask 7168
      %v583 = vsel %vm582, 0.0, %v580
      %v584 = vlaneseq
      %v585 = vshrl.u32 %v584, 7
      %v586 = vsub.s32 3, %v585
      %v587 = vrot.slane %v465, %v586
      %v588 = vmul.f32 %v583, %v587
      %v589 = vlaneseq
      %v590 = vshrl.u32 %v589, 7
      %v591 = vsub.s32 4, %v590
      %v592 = vrot.slane %v465, %v591
      %v593 = vmul.f32 %v459, %v592
      %594 = vrot.lane.b32.xlu0 %v459, 127
      %v595 = vpop.permute.xlu0 %594
      %vm597 = vcmask 515072
      %v598 = vsel %vm597, %v595, 0.0
      %v599 = vlaneseq
      %v600 = vshrl.u32 %v599, 7
      %v601 = vsub.s32 5, %v600
      %v602 = vrot.slane %v465, %v601
      %v603 = vmul.f32 %v598, %v602
      %604 = vrot.lane.b32.xlu0 %v459, 126
      %v605 = vpop.permute.xlu0 %604
      %vm607 = vcmask 506880
      %v608 = vsel %vm607, %v605, 0.0
      %v609 = vlaneseq
      %v610 = vshrl.u32 %v609, 7
      %v611 = vsub.s32 6, %v610
      %v612 = vrot.slane %v465, %v611
      %v613 = vmul.f32 %v608, %v612
      %614 = vrot.lane.b32.xlu0 %v459, 122
      %v615 = vpop.permute.xlu0 %614
      %vm617 = vcmask 474112
      %v618 = vsel %vm617, %v615, 0.0
      %v619 = vlaneseq
      %v620 = vshrl.u32 %v619, 7
      %v621 = vsub.s32 7, %v620
      %v622 = vrot.slane %v465, %v621
      %v623 = vmul.f32 %v618, %v622
      %624 = vrot.lane.b32.xlu0 %v459, 121
      %v625 = vpop.permute.xlu0 %624
      %vm627 = vcmask 465920
      %v628 = vsel %vm627, %v625, 0.0
      %v629 = vlaneseq
      %v630 = vshrl.u32 %v629, 7
      %v631 = vsub.s32 0, %v630
      %v632 = vrot.slane %v466, %v631
      %v633 = vmul.f32 %v628, %v632
      %634 = vrot.lane.b32.xlu0 %v459, 120
      %v635 = vpop.permute.xlu0 %634
      %vm637 = vcmask 457728
      %v638 = vsel %vm637, %v635, 0.0
      %v639 = vlaneseq
      %v640 = vshrl.u32 %v639, 7
      %v641 = vsub.s32 1, %v640
      %v642 = vrot.slane %v466, %v641
      %v643 = vmul.f32 %v638, %v642
      %644 = vrot.lane.b32.xlu0 %v459, 119
      %v645 = vpop.permute.xlu0 %644
      %vm647 = vcmask 449536
      %v648 = vsel %vm647, %v645, 0.0
      %v649 = vlaneseq
      %v650 = vshrl.u32 %v649, 7
      %v651 = vsub.s32 2, %v650
      %v652 = vrot.slane %v466, %v651
      %v653 = vmul.f32 %v648, %v652
      %654 = vrot.lane.b32.xlu0 %v459, 118
      %v655 = vpop.permute.xlu0 %654
      %vm657 = vcmask 441344
      %v658 = vsel %vm657, %v655, 0.0
      %v659 = vlaneseq
      %v660 = vshrl.u32 %v659, 7
      %v661 = vsub.s32 3, %v660
      %v662 = vrot.slane %v466, %v661
      %v663 = vmul.f32 %v658, %v662
      %664 = vrot.lane.b32.xlu0 %v459, 114
      %v665 = vpop.permute.xlu0 %664
      %vm667 = vcmask 408576
      %v668 = vsel %vm667, %v665, 0.0
      %v669 = vlaneseq
      %v670 = vshrl.u32 %v669, 7
      %v671 = vsub.s32 4, %v670
      %v672 = vrot.slane %v466, %v671
      %v673 = vmul.f32 %v668, %v672
      %674 = vrot.lane.b32.xlu0 %v459, 113
      %v675 = vpop.permute.xlu0 %674
      %vm677 = vcmask 400384
      %v678 = vsel %vm677, %v675, 0.0
      %v679 = vlaneseq
      %v680 = vshrl.u32 %v679, 7
      %v681 = vsub.s32 5, %v680
      %v682 = vrot.slane %v466, %v681
      %v683 = vmul.f32 %v678, %v682
      %684 = vrot.lane.b32.xlu0 %v459, 112
      %v685 = vpop.permute.xlu0 %684
      %vm687 = vcmask 392192
      %v688 = vsel %vm687, %v685, 0.0
      %v689 = vlaneseq
      %v690 = vshrl.u32 %v689, 7
      %v691 = vsub.s32 6, %v690
      %v692 = vrot.slane %v466, %v691
      %v693 = vmul.f32 %v688, %v692
      %694 = vrot.lane.b32.xlu0 %v459, 111
      %v695 = vpop.permute.xlu0 %694
      %vm697 = vcmask 384000
      %v698 = vsel %vm697, %v695, 0.0
      %v699 = vlaneseq
      %v700 = vshrl.u32 %v699, 7
      %v701 = vsub.s32 7, %v700
      %v702 = vrot.slane %v466, %v701
      %v703 = vmul.f32 %v698, %v702
      %704 = vrot.lane.b32.xlu0 %v459, 110
      %v705 = vpop.permute.xlu0 %704
      %vm707 = vcmask 375808
      %v708 = vsel %vm707, %v705, 0.0
      %v709 = vlaneseq
      %v710 = vshrl.u32 %v709, 7
      %v711 = vsub.s32 0, %v710
      %v712 = vrot.slane %v467, %v711
      %v713 = vmul.f32 %v708, %v712
      %v715 = vrot.slane %v488, 4
      %v718 = vrot.slane %v508, 4
      %v721 = vrot.slane %v528, 4
      %v724 = vrot.slane %v548, 4
      %v727 = vrot.slane %v568, 4
      %v730 = vrot.slane %v588, 4
      %v733 = vrot.slane %v603, 4
      %v736 = vrot.slane %v623, 4
      %vm738 = vcmask 1043456
      %v739 = vsel %vm738, %v478, %v715
      %v740 = vsel %vm738, %v498, %v718
      %v741 = vsel %vm738, %v518, %v721
      %v742 = vsel %vm738, %v538, %v724
      %v743 = vsel %vm738, %v558, %v727
      %v744 = vsel %vm738, %v578, %v730
      %v745 = vsel %vm738, %v593, %v733
      %v746 = vsel %vm738, %v613, %v736
      %v748 = vrot.slane %v643, 4
      %v751 = vrot.slane %v663, 4
      %v754 = vrot.slane %v683, 4
      %v757 = vrot.slane %v703, 4
      %v759 = vsel %vm738, %v633, %v748
      %v760 = vsel %vm738, %v653, %v751
      %v761 = vsel %vm738, %v673, %v754
      %v762 = vsel %vm738, %v693, %v757
      %v763 = vpack.c.bf16 %v740, %v739
      %v764 = vpack.c.bf16 %v742, %v741
      %v765 = vpack.c.bf16 %v744, %v743
      %v766 = vpack.c.bf16 %v746, %v745
      %v767 = vpack.c.bf16 %v760, %v759
      %v768 = vpack.c.bf16 %v762, %v761
      %v769 = vpack.c.bf16 %v713, %v713
      %771 = vset.pattern.permute.xlu0 0
      %772 = vperm.xlu0 %771, %v462
      %v773 = vpop.permute.xlu0 %772
      %776 = vset.pattern.permute.xlu0 0
      %777 = vperm.xlu0 %776, %v463
      %v778 = vpop.permute.xlu0 %777
      %v782 = vunpack.c.l.b16 %v460
      %v783 = vunpack.c.l.b16 %v461
      %v784 = vpack.c.b16 %v783, %v782
      %vm785 = vcmask 818176
      %v787 = vsel %vm785, %v784, 0
      %vm789 = vcmask 1041408
      %v791 = vsel %vm789, %v769, 0
      %793 = vmatprep.subr.bf16.mxu0 0
      %794 = vmatpush1.bf16.msra.mxu0 %v763
      %795 = vmatprep.subr.bf16.mxu0 0
      %796 = vmatpush1.bf16.msra.mxu0 %v764
      %797 = vmatprep.subr.bf16.mxu0 0
      %798 = vmatpush1.bf16.msra.mxu0 %v765
      %799 = vmatprep.subr.bf16.mxu0 0
      %800 = vmatpush1.bf16.msra.mxu0 %v766
      %801 = vmatprep.subr.bf16.mxu0 0
      %802 = vmatpush1.bf16.msra.mxu0 %v767
      %803 = vmatprep.subr.bf16.mxu0 0
      %804 = vmatpush1.bf16.msra.mxu0 %v768
      %805 = vmatprep.subr.bf16.mxu0 0
      %806 = vmatpush1.bf16.msra.mxu0 %v791
      %807 = vmatprep.subr.bf16.mxu0 0
      %808 = vmatpush1.bf16.msra.mxu0 0
      %809 = vmatprep.subr.bf16.mxu0 0
      %810 = vmatpush1.bf16.msra.mxu0 0
      %811 = vmatprep.subr.bf16.mxu0 0
      %812 = vmatpush1.bf16.msra.mxu0 0
      %813 = vmatprep.subr.bf16.mxu0 0
      %814 = vmatpush1.bf16.msra.mxu0 0
      %815 = vmatprep.subr.bf16.mxu0 0
      %816 = vmatpush1.bf16.msra.mxu0 0
      %817 = vmatprep.subr.bf16.mxu0 0
      %818 = vmatpush1.bf16.msra.mxu0 0
      %819 = vmatprep.subr.bf16.mxu0 0
      %820 = vmatpush1.bf16.msra.mxu0 0
      %821 = vmatprep.subr.bf16.mxu0 0
      %822 = vmatpush1.bf16.msra.mxu0 0
      %823 = vmatprep.subr.bf16.mxu0 0
      %824 = vmatpush1.bf16.msra.mxu0 0
      %825 = vmatprep.mubr.bf16.mxu0 0
      %826 = vmatmul.mubr.bf16.gmra.mrb[0].mxu0 %v787
      %v827 = vpop.f32.mrb[0].mxu0
      %v828 = vadd.f32 %v773, %v827
      %v829 = vpop.f32.mrb[0].mxu0
      %v830 = vpop.f32.mrb[0].mxu0
      %v831 = vadd.f32 %v778, %v830
      %v832 = vpop.f32.mrb[0].mxu0
      %833 = vdwg.mxu0
      %v834 = vpack.c.bf16 %v831, %v828
      %v835 = vld [vmem:[%s9] sm:$0xff]
      %v836 = vld [vmem:[%s9 + $0x8] sm:$0xff]
      %v837 = vld [vmem:[%s9 + $0x10] sm:$0xff]
      %v838 = vld [vmem:[%s9 + $0x18] sm:$0xff]
      %v839 = vld [vmem:[%s9 + $0x20] sm:$0xff]
      %v840 = vld [vmem:[%s9 + $0x28] sm:$0xff]
      %v841 = vld [vmem:[%s9 + $0x30] sm:$0xff]
      %v842 = vld [vmem:[%s9 + $0x38] sm:$0xff]
      %v851 = vunpack.c.l.b16 %v835
      %v852 = vunpack.c.h.b16 %v835
      %v853 = vunpack.c.l.b16 %v836
      %v854 = vunpack.c.h.b16 %v836
      %v855 = vunpack.c.l.b16 %v837
      %v856 = vunpack.c.h.b16 %v837
      %v857 = vunpack.c.l.b16 %v838
      %v858 = vunpack.c.h.b16 %v838
      %v859 = vunpack.c.l.b16 %v839
      %v860 = vunpack.c.h.b16 %v839
      %v861 = vunpack.c.l.b16 %v840
      %v862 = vunpack.c.h.b16 %v840
      %v863 = vunpack.c.l.b16 %v841
      %v864 = vunpack.c.h.b16 %v841
      %v865 = vunpack.c.l.b16 %v842
      %v866 = vunpack.c.h.b16 %v842
      %v867 = vpack.c.b16 %v853, %v851
      %v868 = vpack.c.b16 %v854, %v852
      %v869 = vpack.c.b16 %v857, %v855
      %v870 = vpack.c.b16 %v858, %v856
      %v871 = vpack.c.b16 %v861, %v859
      %v872 = vpack.c.b16 %v862, %v860
      %v873 = vpack.c.b16 %v865, %v863
      %v874 = vpack.c.b16 %v866, %v864
      %vm883 = vcmask 523264
      %v885 = vsel %vm883, %v834, 0
      %887 = vmatprep.subr.bf16.mxu0 %v868
      %888 = vmatpush1.bf16.msra.mxu0 %v867
      %889 = vmatprep.subr.bf16.mxu0 %v870
      %890 = vmatpush1.bf16.msra.mxu0 %v869
      %891 = vmatprep.subr.bf16.mxu0 %v872
      %892 = vmatpush1.bf16.msra.mxu0 %v871
      %893 = vmatprep.subr.bf16.mxu0 %v874
      %894 = vmatpush1.bf16.msra.mxu0 %v873
      %895 = vmatprep.subr.bf16.mxu0 0
      %896 = vmatpush1.bf16.msra.mxu0 0
      %897 = vmatprep.subr.bf16.mxu0 0
      %898 = vmatpush1.bf16.msra.mxu0 0
      %899 = vmatprep.subr.bf16.mxu0 0
      %900 = vmatpush1.bf16.msra.mxu0 0
      %901 = vmatprep.subr.bf16.mxu0 0
      %902 = vmatpush1.bf16.msra.mxu0 0
      %903 = vmatprep.subr.bf16.mxu0 0
      %904 = vmatpush1.bf16.msra.mxu0 0
      %905 = vmatprep.subr.bf16.mxu0 0
      %906 = vmatpush1.bf16.msra.mxu0 0
      %907 = vmatprep.subr.bf16.mxu0 0
      %908 = vmatpush1.bf16.msra.mxu0 0
      %909 = vmatprep.subr.bf16.mxu0 0
      %910 = vmatpush1.bf16.msra.mxu0 0
      %911 = vmatprep.subr.bf16.mxu0 0
      %912 = vmatpush1.bf16.msra.mxu0 0
      %913 = vmatprep.subr.bf16.mxu0 0
      %914 = vmatpush1.bf16.msra.mxu0 0
      %915 = vmatprep.subr.bf16.mxu0 0
      %916 = vmatpush1.bf16.msra.mxu0 0
      %917 = vmatprep.subr.bf16.mxu0 0
      %918 = vmatpush1.bf16.msra.mxu0 0
      %919 = vmatprep.mubr.bf16.mxu0 0
      %920 = vmatmul.mubr.bf16.gmra.mrb[0].mxu0 %v885
      %v921 = vpop.f32.mrb[0].mxu0
      %v922 = vadd.f32 0.0, %v921
      %v923 = vpop.f32.mrb[0].mxu0
      %v924 = vadd.f32 0.0, %v923
      %v925 = vpop.f32.mrb[0].mxu0
      %v926 = vadd.f32 0.0, %v925
      %v927 = vpop.f32.mrb[0].mxu0
      %v928 = vadd.f32 0.0, %v927
      %929 = vdwg.mxu0
      %v930 = vld [vmem:[%s11] sm:$0xff]
      %v931 = vld [vmem:[%s11 + $0x8] sm:$0xff]
      %v932 = vld [vmem:[%s11 + $0x10] sm:$0x1]
      %v933 = vld [vmem:[%s11 + $0x18] sm:$0x1]
      %v934 = vld [vmem:[%s448] sm:$0xff]
      %v935 = vld [vmem:[%s3] sm:$0x3]
      %v936 = vld [vmem:[%s4] sm:$0xf]
      %v938 = vcombine.high %v934, %v934
      %939 = vrot.lane.b32.xlu0 %v934, 17
      %v940 = vpop.permute.xlu0 %939
      %941 = vrot.lane.b32.xlu0 %v938, 17
      %v942 = vpop.permute.xlu0 %941
      %v943 = vsel %vm482, %v940, %v942
      %v946 = vsel %vm482, 0.0, %v940
      %v947 = vlaneseq
      %v948 = vshrl.u32 %v947, 7
      %v949 = vsub.s32 0, %v948
      %v950 = vrot.slane %v930, %v949
      %v951 = vlaneseq
      %v952 = vshrl.u32 %v951, 7
      %v953 = vsub.s32 0, %v952
      %v954 = vrot.slane %v931, %v953
      %v955 = vmul.f32 %v946, %v950
      %v956 = vmul.f32 %v943, %v954
      %957 = vrot.lane.b32.xlu0 %v934, 16
      %v958 = vpop.permute.xlu0 %957
      %959 = vrot.lane.b32.xlu0 %v938, 16
      %v960 = vpop.permute.xlu0 %959
      %v961 = vsel %vm492, %v958, %v960
      %v964 = vsel %vm492, 0.0, %v958
      %v965 = vlaneseq
      %v966 = vshrl.u32 %v965, 7
      %v967 = vsub.s32 1, %v966
      %v968 = vrot.slane %v930, %v967
      %v969 = vlaneseq
      %v970 = vshrl.u32 %v969, 7
      %v971 = vsub.s32 1, %v970
      %v972 = vrot.slane %v931, %v971
      %v973 = vmul.f32 %v964, %v968
      %v974 = vmul.f32 %v961, %v972
      %975 = vrot.lane.b32.xlu0 %v934, 15
      %v976 = vpop.permute.xlu0 %975
      %977 = vrot.lane.b32.xlu0 %v938, 15
      %v978 = vpop.permute.xlu0 %977
      %v979 = vsel %vm502, %v976, %v978
      %v982 = vsel %vm502, 0.0, %v976
      %v983 = vlaneseq
      %v984 = vshrl.u32 %v983, 7
      %v985 = vsub.s32 2, %v984
      %v986 = vrot.slane %v930, %v985
      %v987 = vlaneseq
      %v988 = vshrl.u32 %v987, 7
      %v989 = vsub.s32 2, %v988
      %v990 = vrot.slane %v931, %v989
      %v991 = vmul.f32 %v982, %v986
      %v992 = vmul.f32 %v979, %v990
      %993 = vrot.lane.b32.xlu0 %v934, 1
      %v994 = vpop.permute.xlu0 %993
      %995 = vrot.lane.b32.xlu0 %v938, 1
      %v996 = vpop.permute.xlu0 %995
      %v997 = vsel %vm582, %v994, %v996
      %v1000 = vsel %vm582, 0.0, %v994
      %v1001 = vlaneseq
      %v1002 = vshrl.u32 %v1001, 7
      %v1003 = vsub.s32 3, %v1002
      %v1004 = vrot.slane %v930, %v1003
      %v1005 = vlaneseq
      %v1006 = vshrl.u32 %v1005, 7
      %v1007 = vsub.s32 3, %v1006
      %v1008 = vrot.slane %v931, %v1007
      %v1009 = vmul.f32 %v1000, %v1004
      %v1010 = vmul.f32 %v997, %v1008
      %v1011 = vlaneseq
      %v1012 = vshrl.u32 %v1011, 7
      %v1013 = vsub.s32 4, %v1012
      %v1014 = vrot.slane %v930, %v1013
      %v1015 = vlaneseq
      %v1016 = vshrl.u32 %v1015, 7
      %v1017 = vsub.s32 4, %v1016
      %v1018 = vrot.slane %v931, %v1017
      %v1021 = vcombine.low %v1014, %v1018
      %v1023 = vmul.f32 %v934, %v1021
      %1024 = vrot.lane.b32.xlu0 %v934, 127
      %v1025 = vpop.permute.xlu0 %1024
      %1026 = vrot.lane.b32.xlu0 %v938, 127
      %v1027 = vpop.permute.xlu0 %1026
      %vm1028 = vcmask 1039360
      %v1029 = vsel %vm1028, %v1025, %v1027
      %v1032 = vsel %vm1028, %v1027, 0.0
      %v1033 = vlaneseq
      %v1034 = vshrl.u32 %v1033, 7
      %v1035 = vsub.s32 5, %v1034
      %v1036 = vrot.slane %v930, %v1035
      %v1037 = vlaneseq
      %v1038 = vshrl.u32 %v1037, 7
      %v1039 = vsub.s32 5, %v1038
      %v1040 = vrot.slane %v931, %v1039
      %v1041 = vmul.f32 %v1029, %v1036
      %v1042 = vmul.f32 %v1032, %v1040
      %1043 = vrot.lane.b32.xlu0 %v934, 113
      %v1044 = vpop.permute.xlu0 %1043
      %1045 = vrot.lane.b32.xlu0 %v938, 113
      %v1046 = vpop.permute.xlu0 %1045
      %vm1047 = vcmask 924672
      %v1048 = vsel %vm1047, %v1044, %v1046
      %v1051 = vsel %vm1047, %v1046, 0.0
      %v1052 = vlaneseq
      %v1053 = vshrl.u32 %v1052, 7
      %v1054 = vsub.s32 6, %v1053
      %v1055 = vrot.slane %v930, %v1054
      %v1056 = vlaneseq
      %v1057 = vshrl.u32 %v1056, 7
      %v1058 = vsub.s32 6, %v1057
      %v1059 = vrot.slane %v931, %v1058
      %v1060 = vmul.f32 %v1048, %v1055
      %v1061 = vmul.f32 %v1051, %v1059
      %1062 = vrot.lane.b32.xlu0 %v934, 112
      %v1063 = vpop.permute.xlu0 %1062
      %1064 = vrot.lane.b32.xlu0 %v938, 112
      %v1065 = vpop.permute.xlu0 %1064
      %vm1066 = vcmask 916480
      %v1067 = vsel %vm1066, %v1063, %v1065
      %v1070 = vsel %vm1066, %v1065, 0.0
      %v1071 = vlaneseq
      %v1072 = vshrl.u32 %v1071, 7
      %v1073 = vsub.s32 7, %v1072
      %v1074 = vrot.slane %v930, %v1073
      %v1075 = vlaneseq
      %v1076 = vshrl.u32 %v1075, 7
      %v1077 = vsub.s32 7, %v1076
      %v1078 = vrot.slane %v931, %v1077
      %v1079 = vmul.f32 %v1067, %v1074
      %v1080 = vmul.f32 %v1070, %v1078
      %1081 = vrot.lane.b32.xlu0 %v934, 111
      %v1082 = vpop.permute.xlu0 %1081
      %1083 = vrot.lane.b32.xlu0 %v938, 111
      %v1084 = vpop.permute.xlu0 %1083
      %vm1085 = vcmask 908288
      %v1086 = vsel %vm1085, %v1082, %v1084
      %v1089 = vsel %vm1085, %v1084, 0.0
      %v1090 = vlaneseq
      %v1091 = vshrl.u32 %v1090, 7
      %v1092 = vsub.s32 0, %v1091
      %v1093 = vrot.slane %v932, %v1092
      %v1094 = vlaneseq
      %v1095 = vshrl.u32 %v1094, 7
      %v1096 = vsub.s32 0, %v1095
      %v1097 = vrot.slane %v933, %v1096
      %v1098 = vmul.f32 %v1086, %v1093
      %v1099 = vmul.f32 %v1089, %v1097
      %v1102 = vrot.slane %v973, 4
      %v1103 = vrot.slane %v974, 4
      %v1108 = vrot.slane %v1009, 4
      %v1109 = vrot.slane %v1010, 4
      %v1113 = vcombine.high %v1023, %v1023
      %v1117 = vrot.slane %v1041, 4
      %v1118 = vrot.slane %v1042, 4
      %v1123 = vrot.slane %v1079, 4
      %v1124 = vrot.slane %v1080, 4
      %v1127 = vsel %vm738, %v955, %v1102
      %v1128 = vsel %vm738, %v956, %v1103
      %v1129 = vsel %vm738, %v991, %v1108
      %v1130 = vsel %vm738, %v992, %v1109
      %v1131 = vsel %vm738, %v1023, %v1117
      %v1132 = vsel %vm738, %v1113, %v1118
      %v1133 = vsel %vm738, %v1060, %v1123
      %v1134 = vsel %vm738, %v1061, %v1124
      %v1135 = vpack.c.bf16 %v1129, %v1127
      %v1136 = vpack.c.bf16 %v1130, %v1128
      %v1137 = vpack.c.bf16 %v1133, %v1131
      %v1138 = vpack.c.bf16 %v1134, %v1132
      %v1139 = vpack.c.bf16 %v1098, %v1098
      %v1140 = vpack.c.bf16 %v1099, %v1099
      %1142 = vset.pattern.permute.xlu0 0
      %1143 = vperm.xlu0 %1142, %v936
      %v1144 = vpop.permute.xlu0 %1143
      %vm1146 = vcmask 293888
      %v1148 = vsel %vm1146, %v935, 0
      %v1151 = vsel %vm789, %v1139, 0
      %v1154 = vsel %vm789, %v1140, 0
      %1156 = vmatprep.subr.bf16.mxu0 %v1136
      %1157 = vmatpush1.bf16.msra.mxu0 %v1135
      %1158 = vmatprep.subr.bf16.mxu0 %v1138
      %1159 = vmatpush1.bf16.msra.mxu0 %v1137
      %1160 = vmatprep.subr.bf16.mxu0 %v1154
      %1161 = vmatpush1.bf16.msra.mxu0 %v1151
      %1162 = vmatprep.subr.bf16.mxu0 0
      %1163 = vmatpush1.bf16.msra.mxu0 0
      %1164 = vmatprep.subr.bf16.mxu0 0
      %1165 = vmatpush1.bf16.msra.mxu0 0
      %1166 = vmatprep.subr.bf16.mxu0 0
      %1167 = vmatpush1.bf16.msra.mxu0 0
      %1168 = vmatprep.subr.bf16.mxu0 0
      %1169 = vmatpush1.bf16.msra.mxu0 0
      %1170 = vmatprep.subr.bf16.mxu0 0
      %1171 = vmatpush1.bf16.msra.mxu0 0
      %1172 = vmatprep.subr.bf16.mxu0 0
      %1173 = vmatpush1.bf16.msra.mxu0 0
      %1174 = vmatprep.subr.bf16.mxu0 0
      %1175 = vmatpush1.bf16.msra.mxu0 0
      %1176 = vmatprep.subr.bf16.mxu0 0
      %1177 = vmatpush1.bf16.msra.mxu0 0
      %1178 = vmatprep.subr.bf16.mxu0 0
      %1179 = vmatpush1.bf16.msra.mxu0 0
      %1180 = vmatprep.subr.bf16.mxu0 0
      %1181 = vmatpush1.bf16.msra.mxu0 0
      %1182 = vmatprep.subr.bf16.mxu0 0
      %1183 = vmatpush1.bf16.msra.mxu0 0
      %1184 = vmatprep.subr.bf16.mxu0 0
      %1185 = vmatpush1.bf16.msra.mxu0 0
      %1186 = vmatprep.subr.bf16.mxu0 0
      %1187 = vmatpush1.bf16.msra.mxu0 0
      %1188 = vmatprep.mubr.bf16.mxu0 0
      %1189 = vmatmul.mubr.bf16.gmra.mrb[0].mxu0 %v1148
      %v1190 = vpop.f32.mrb[0].mxu0
      %v1191 = vadd.f32 %v1144, %v1190
      %v1192 = vpop.f32.mrb[0].mxu0
      %v1193 = vadd.f32 %v1144, %v1192
      %v1194 = vpop.f32.mrb[0].mxu0
      %v1195 = vpop.f32.mrb[0].mxu0
      %1196 = vdwg.mxu0
      %v1197 = vld [vmem:[%s2] sm:$0xff]
      %v1198 = vld [vmem:[%s10] sm:$0xf]
      %1200 = vset.pattern.permute.xlu0 0
      %1201 = vperm.xlu0 %1200, %v1198
      %v1202 = vpop.permute.xlu0 %1201
      %v1205 = vcombine.high %v1197, %v1197
      %v1207 = vmul.f32 %v1202, %v1197
      %v1208 = vmul.f32 %v1202, %v1205
      %v1209 = vadd.f32 %v1191, %v1207
      %v1210 = vadd.f32 %v1193, %v1208
      %v1211 = vsel %vm738, %v1209, 0.0
      %v1212 = vsel %vm738, %v1210, 0.0
      %v1213 = vadd.f32 %v1211, %v1212
      %1214 = vadd.xlane.f32.xlu0 %v1213
      %v1215 = vpop.xlane.xlu0 %1214
      %v1216 = vrcp.pop 256.0
      %v1217 = vmul.f32 %v1215, %v1216
      %v1218 = vsub.f32 %v1209, %v1217
      %v1219 = vsub.f32 %v1210, %v1217
      %v1220 = vmul.f32 %v1218, %v1218
      %v1221 = vmul.f32 %v1219, %v1219
      %v1222 = vsel %vm738, %v1220, 0.0
      %v1223 = vsel %vm738, %v1221, 0.0
      %v1224 = vadd.f32 %v1222, %v1223
      %1225 = vadd.xlane.f32.xlu0 %v1224
      %v1226 = vpop.xlane.xlu0 %1225
      %v1227 = vmul.f32 %v1226, %v1216
      %v1228 = vadd.f32 %v1227, 1e-05
      %v1229 = vrsqrt.pop %v1228
      %v1230 = vmul.f32 %v1218, %v1229
      %v1231 = vmul.f32 %v1219, %v1229
      %v1234 = vrot.slane %v1230, 4
      %v1235 = vrot.slane %v1231, 4
      %v1238 = vmul.f32 %v922, %v1234
      %v1239 = vmul.f32 %v924, %v1235
      %v1242 = vrot.slane %v1238, 4
      %v1243 = vrot.slane %v1239, 4
      %v1246 = vadd.f32 %v922, %v1242
      %v1247 = vadd.f32 %v924, %v1243
      %v1248 = vtanh.pop %v1246
      %v1249 = vtanh.pop %v1247
      %v1250 = vld [vmem:[%s5] sm:$0x3]
      %v1251 = vld [vmem:[%s6] sm:$0xf]
      %1254 = vrot.lane.b32.xlu0 %v1248, 17
      %v1255 = vpop.permute.xlu0 %1254
      %1256 = vrot.lane.b32.xlu0 %v1249, 17
      %v1257 = vpop.permute.xlu0 %1256
      %v1258 = vsel %vm482, %v1255, %v1257
      %v1261 = vsel %vm482, 0.0, %v1255
      %v1262 = vmul.f32 %v1261, %v950
      %v1263 = vmul.f32 %v1258, %v954
      %1264 = vrot.lane.b32.xlu0 %v1248, 16
      %v1265 = vpop.permute.xlu0 %1264
      %1266 = vrot.lane.b32.xlu0 %v1249, 16
      %v1267 = vpop.permute.xlu0 %1266
      %v1268 = vsel %vm492, %v1265, %v1267
      %v1271 = vsel %vm492, 0.0, %v1265
      %v1272 = vmul.f32 %v1271, %v968
      %v1273 = vmul.f32 %v1268, %v972
      %1274 = vrot.lane.b32.xlu0 %v1248, 15
      %v1275 = vpop.permute.xlu0 %1274
      %1276 = vrot.lane.b32.xlu0 %v1249, 15
      %v1277 = vpop.permute.xlu0 %1276
      %v1278 = vsel %vm502, %v1275, %v1277
      %v1281 = vsel %vm502, 0.0, %v1275
      %v1282 = vmul.f32 %v1281, %v986
      %v1283 = vmul.f32 %v1278, %v990
      %1284 = vrot.lane.b32.xlu0 %v1248, 1
      %v1285 = vpop.permute.xlu0 %1284
      %1286 = vrot.lane.b32.xlu0 %v1249, 1
      %v1287 = vpop.permute.xlu0 %1286
      %v1288 = vsel %vm582, %v1285, %v1287
      %v1291 = vsel %vm582, 0.0, %v1285
      %v1292 = vmul.f32 %v1291, %v1004
      %v1293 = vmul.f32 %v1288, %v1008
      %v1294 = vmul.f32 %v1248, %v1014
      %v1295 = vmul.f32 %v1249, %v1018
      %1296 = vrot.lane.b32.xlu0 %v1248, 127
      %v1297 = vpop.permute.xlu0 %1296
      %1298 = vrot.lane.b32.xlu0 %v1249, 127
      %v1299 = vpop.permute.xlu0 %1298
      %v1300 = vsel %vm1028, %v1297, %v1299
      %v1303 = vsel %vm1028, %v1299, 0.0
      %v1304 = vmul.f32 %v1300, %v1036
      %v1305 = vmul.f32 %v1303, %v1040
      %1306 = vrot.lane.b32.xlu0 %v1248, 113
      %v1307 = vpop.permute.xlu0 %1306
      %1308 = vrot.lane.b32.xlu0 %v1249, 113
      %v1309 = vpop.permute.xlu0 %1308
      %v1310 = vsel %vm1047, %v1307, %v1309
      %v1313 = vsel %vm1047, %v1309, 0.0
      %v1314 = vmul.f32 %v1310, %v1055
      %v1315 = vmul.f32 %v1313, %v1059
      %1316 = vrot.lane.b32.xlu0 %v1248, 112
      %v1317 = vpop.permute.xlu0 %1316
      %1318 = vrot.lane.b32.xlu0 %v1249, 112
      %v1319 = vpop.permute.xlu0 %1318
      %v1320 = vsel %vm1066, %v1317, %v1319
      %v1323 = vsel %vm1066, %v1319, 0.0
      %v1324 = vmul.f32 %v1320, %v1074
      %v1325 = vmul.f32 %v1323, %v1078
      %1326 = vrot.lane.b32.xlu0 %v1248, 111
      %v1327 = vpop.permute.xlu0 %1326
      %1328 = vrot.lane.b32.xlu0 %v1249, 111
      %v1329 = vpop.permute.xlu0 %1328
      %v1330 = vsel %vm1085, %v1327, %v1329
      %v1333 = vsel %vm1085, %v1329, 0.0
      %v1334 = vmul.f32 %v1330, %v1093
      %v1335 = vmul.f32 %v1333, %v1097
      %v1338 = vrot.slane %v1272, 4
      %v1339 = vrot.slane %v1273, 4
      %v1344 = vrot.slane %v1292, 4
      %v1345 = vrot.slane %v1293, 4
      %v1350 = vrot.slane %v1304, 4
      %v1351 = vrot.slane %v1305, 4
      %v1356 = vrot.slane %v1324, 4
      %v1357 = vrot.slane %v1325, 4
      %v1360 = vsel %vm738, %v1262, %v1338
      %v1361 = vsel %vm738, %v1263, %v1339
      %v1362 = vsel %vm738, %v1282, %v1344
      %v1363 = vsel %vm738, %v1283, %v1345
      %v1364 = vsel %vm738, %v1294, %v1350
      %v1365 = vsel %vm738, %v1295, %v1351
      %v1366 = vsel %vm738, %v1314, %v1356
      %v1367 = vsel %vm738, %v1315, %v1357
      %v1368 = vpack.c.bf16 %v1362, %v1360
      %v1369 = vpack.c.bf16 %v1363, %v1361
      %v1370 = vpack.c.bf16 %v1366, %v1364
      %v1371 = vpack.c.bf16 %v1367, %v1365
      %v1372 = vpack.c.bf16 %v1334, %v1334
      %v1373 = vpack.c.bf16 %v1335, %v1335
      %1375 = vset.pattern.permute.xlu0 0
      %1376 = vperm.xlu0 %1375, %v1251
      %v1377 = vpop.permute.xlu0 %1376
      %v1380 = vsel %vm1146, %v1250, 0
      %v1383 = vsel %vm789, %v1372, 0
      %v1386 = vsel %vm789, %v1373, 0
      %1388 = vmatprep.subr.bf16.mxu0 %v1369
      %1389 = vmatpush1.bf16.msra.mxu0 %v1368
      %1390 = vmatprep.subr.bf16.mxu0 %v1371
      %1391 = vmatpush1.bf16.msra.mxu0 %v1370
      %1392 = vmatprep.subr.bf16.mxu0 %v1386
      %1393 = vmatpush1.bf16.msra.mxu0 %v1383
      %1394 = vmatprep.subr.bf16.mxu0 0
      %1395 = vmatpush1.bf16.msra.mxu0 0
      %1396 = vmatprep.subr.bf16.mxu0 0
      %1397 = vmatpush1.bf16.msra.mxu0 0
      %1398 = vmatprep.subr.bf16.mxu0 0
      %1399 = vmatpush1.bf16.msra.mxu0 0
      %1400 = vmatprep.subr.bf16.mxu0 0
      %1401 = vmatpush1.bf16.msra.mxu0 0
      %1402 = vmatprep.subr.bf16.mxu0 0
      %1403 = vmatpush1.bf16.msra.mxu0 0
      %1404 = vmatprep.subr.bf16.mxu0 0
      %1405 = vmatpush1.bf16.msra.mxu0 0
      %1406 = vmatprep.subr.bf16.mxu0 0
      %1407 = vmatpush1.bf16.msra.mxu0 0
      %1408 = vmatprep.subr.bf16.mxu0 0
      %1409 = vmatpush1.bf16.msra.mxu0 0
      %1410 = vmatprep.subr.bf16.mxu0 0
      %1411 = vmatpush1.bf16.msra.mxu0 0
      %1412 = vmatprep.subr.bf16.mxu0 0
      %1413 = vmatpush1.bf16.msra.mxu0 0
      %1414 = vmatprep.subr.bf16.mxu0 0
      %1415 = vmatpush1.bf16.msra.mxu0 0
      %1416 = vmatprep.subr.bf16.mxu0 0
      %1417 = vmatpush1.bf16.msra.mxu0 0
      %1418 = vmatprep.subr.bf16.mxu0 0
      %1419 = vmatpush1.bf16.msra.mxu0 0
      %1420 = vmatprep.mubr.bf16.mxu0 0
      %1421 = vmatmul.mubr.bf16.gmra.mrb[0].mxu0 %v1380
      %v1422 = vpop.f32.mrb[0].mxu0
      %v1423 = vadd.f32 %v1377, %v1422
      %v1424 = vpop.f32.mrb[0].mxu0
      %v1425 = vadd.f32 %v1377, %v1424
      %v1426 = vpop.f32.mrb[0].mxu0
      %v1427 = vpop.f32.mrb[0].mxu0
      %1428 = vdwg.mxu0
      %s1429 = scalar_lea.vmem %s2, 8
      %v1430 = vld [vmem:[%s1429] sm:$0xff]
      %s1431 = scalar_lea.vmem %s10, 4
      %v1432 = vld [vmem:[%s1431] sm:$0xf]
      %1434 = vset.pattern.permute.xlu0 0
      %1435 = vperm.xlu0 %1434, %v1432
      %v1436 = vpop.permute.xlu0 %1435
      %v1439 = vcombine.high %v1430, %v1430
      %v1441 = vmul.f32 %v1436, %v1430
      %v1442 = vmul.f32 %v1436, %v1439
      %v1443 = vadd.f32 %v1423, %v1441
      %v1444 = vadd.f32 %v1425, %v1442
      %v1445 = vsel %vm738, %v1443, 0.0
      %v1446 = vsel %vm738, %v1444, 0.0
      %v1447 = vadd.f32 %v1445, %v1446
      %1448 = vadd.xlane.f32.xlu0 %v1447
      %v1449 = vpop.xlane.xlu0 %1448
      %v1450 = vmul.f32 %v1449, %v1216
      %v1451 = vsub.f32 %v1443, %v1450
      %v1452 = vsub.f32 %v1444, %v1450
      %v1453 = vmul.f32 %v1451, %v1451
      %v1454 = vmul.f32 %v1452, %v1452
      %v1455 = vsel %vm738, %v1453, 0.0
      %v1456 = vsel %vm738, %v1454, 0.0
      %v1457 = vadd.f32 %v1455, %v1456
      %1458 = vadd.xlane.f32.xlu0 %v1457
      %v1459 = vpop.xlane.xlu0 %1458
      %v1460 = vmul.f32 %v1459, %v1216
      %v1461 = vadd.f32 %v1460, 1e-05
      %v1462 = vrsqrt.pop %v1461
      %v1463 = vmul.f32 %v1451, %v1462
      %v1464 = vmul.f32 %v1452, %v1462
      %v1467 = vrot.slane %v1463, 4
      %v1468 = vrot.slane %v1464, 4
      %v1471 = vmul.f32 %v926, %v1467
      %v1472 = vmul.f32 %v928, %v1468
      %v1475 = vrot.slane %v1471, 4
      %v1476 = vrot.slane %v1472, 4
      %v1479 = vadd.f32 %v926, %v1475
      %v1480 = vadd.f32 %v928, %v1476
      %v1481 = vtanh.pop %v1479
      %v1482 = vtanh.pop %v1480
      %v1485 = vcombine.low %v1481, %v1482
      %1487 = vst [vmem:[%s457] sm:$0xff] %v1485
      %p1488 = scmp.lt.s32.totalorder %s24, 1
      %s1489 = scalar_select %p1488, %s24, 1
      %s1490 = smul.addr %s1489, 2
      %s1491 = smul.addr %s1490, 4
      %s1492 = scalar_lea.vmem %s13, %s1491
      // Predicated region
      $region73: #{stylegan_block.1} parent=71 // pred_check
        %p1493 = pneg %p325
      $region74: #{stylegan_block.1} parent=71 // pred_check_branch
        %1495 = sbr.rel (%p1493) target = $region76
      $region75: #{stylegan_block.1} parent=71 // pred_region
        _
      $region76: #{stylegan_block.1} parent=71 // pred_fallthru
        _
    $region72: #{stylegan_block.1} parent=5 // pred_fallthru
      _
    %p1496 = scmp.le.s32.totalorder 2, %s19
    // Predicated region
    $region77: #{stylegan_block.1} parent=5 // pred_check
      %p1497 = pneg %p1496
    $region78: #{stylegan_block.1} parent=5 // pred_check_branch
      %1499 = sbr.rel (%p1497) target = $region80
    $region79: #{stylegan_block.1} parent=5 // pred_region
      %s1500 = ssub.s32 %s19, 2
      // Predicated region
      $region81: #{stylegan_block.1} parent=79 // pred_check
        %p1501 = pneg %p331
      $region82: #{stylegan_block.1} parent=79 // pred_check_branch
        %1503 = sbr.rel (%p1501) target = $region84
      $region83: #{stylegan_block.1} parent=79 // pred_region
        %p1504 = scmp.lt.s32.totalorder %s25, 1
        %s1505 = scalar_select %p1504, %s25, 1
        %s1506 = smul.addr %s1505, 2
        %s1507 = smul.addr %s1506, 4
        %s1508 = scalar_lea.vmem %s13, %s1507
      $region84: #{stylegan_block.1} parent=79 // pred_fallthru
        _
    $region80: #{stylegan_block.1} parent=5 // pred_fallthru
      _
  $region6: #{stylegan_block.1} parent=0 // loop_footer
    %s23 = sadd.s32 1, %s19
  $region7: #{stylegan_block.1} parent=0 // loop_footer_branch
    %18 = sbr.rel target = $region3
  $region8: #{stylegan_block.1} parent=0 // loop_exit
    _

</llo_original>
